<compile_context>
chip_gen: v7x
topology: tpu7x:2x2x1
jax: 0.10.0
libtpu: 0.0.40
codegen_flags: <defaults>
</compile_context>

<pallas_src>
import jax
import jax.numpy as jnp
from jax.experimental import pallas as pl
from jax.experimental.pallas import tpu as pltpu


def rnn_fc_kernel(x_ref,      # ((T+1)*Bp, D)  time-major, batch-padded, +1 zero block
                  wih0_ref,   # (D, 2H)        [Wih0 | 0]
                  wc_ref,     # (2H, 2H)       [[Whh0, Wih1], [0, Whh1]]
                  bias_ref,   # ((T+1)*Bp, 2H) per-row additive term
                  wfc_ref,    # (T*2H, C)      per-step FC blocks [0 ; Wfc_t]
                  bfc_ref,    # (1, C)         FC bias
                  out_ref):   # (Bp, C)
    Bp, C = out_ref.shape
    H2 = wc_ref.shape[0]          # 2H
    T = wfc_ref.shape[0] // H2

    # ---- Hoisted, off the serial chain: layer-0 input projection for every
    #      step at once, already laid out at the fused 2H width, plus the
    #      precomputed per-block bias terms.
    xb = (jnp.dot(x_ref[...], wih0_ref[...],
                  preferred_element_type=jnp.float32) + bias_ref[...])

    wc = wc_ref[...]
    # Fold the FC bias into the accumulator init (saves a final add / input use).
    acc = jnp.broadcast_to(bfc_ref[...], (Bp, C)).astype(jnp.float32)

    # ---- Prologue: initial hidden states are zero, so step 0 needs no matmul.
    #      xb block 0 is [x_0 @ Wih0 + b0 | 0]  ->  st = [h0_0 | 0].
    st = jnp.tanh(xb[0:Bp, :])

    # ---- Interleaved recurrence: iteration i yields st = [h0_i | h1_{i-1}].
    #      Exactly one dependent (Bp,2H)x(2H,2H) matmul + one tanh per step;
    #      the accumulating FC dot hangs off the chain.
    for i in range(1, T + 1):
        st = jnp.tanh(xb[i * Bp:(i + 1) * Bp, :]
                      + jnp.dot(st, wc, preferred_element_type=jnp.float32))
        # At i == T the h0 half of st is junk; the zero rows of wfc_ref kill it.
        acc = acc + jnp.dot(st, wfc_ref[(i - 1) * H2:i * H2, :],
                            preferred_element_type=jnp.float32)

    out_ref[...] = acc


def prepare_params(params, batch_pad=8):
    """One-time packing of the PyTorch-style parameters for the fused kernel."""
    assert batch_pad % 8 == 0, "padded batch must be a sublane multiple"
    f32 = jnp.float32
    D, H = params["w_ih0"].shape
    TH, C = params["w_fc"].shape
    T = TH // H

    # Fused recurrent weight: [h0 | h1] @ [[Whh0, Wih1], [0, Whh1]].
    wc = jnp.concatenate(
        [jnp.concatenate([params["w_hh0"], params["w_ih1"]], axis=1),
         jnp.concatenate([jnp.zeros((H, H), f32), params["w_hh1"]], axis=1)],
        axis=0)                                                       # (2H, 2H)

    # Layer-0 input weights, lane-extended to 2H (second half zero).
    wih0_ext = jnp.concatenate(
        [params["w_ih0"], jnp.zeros((D, H), f32)], axis=1)            # (D, 2H)

    # FC weights rearranged so the accumulating dot takes the fused (Bp, 2H)
    # state: rows 0..H-1 of each time block are zero (mask the h0/junk half).
    wfc2 = jnp.concatenate(
        [jnp.zeros((T, H, C), f32), params["w_fc"].reshape(T, H, C)],
        axis=1).reshape(T * 2 * H, C)                                 # (T*2H, C)

    # Per-row additive term for the fused update, repeated over the padded
    # batch: block 0 = [b0 | 0], blocks 1..T-1 = [b0 | b1], block T = [0 | b1].
    b0 = (params["b_ih0"] + params["b_hh0"]).reshape(1, H)
    b1 = (params["b_ih1"] + params["b_hh1"]).reshape(1, H)
    z = jnp.zeros((1, H), f32)
    bias_plan = jnp.concatenate(
        [jnp.concatenate([b0, z], axis=1)]
        + [jnp.concatenate([b0, b1], axis=1)] * (T - 1)
        + [jnp.concatenate([z, b1], axis=1)], axis=0)                 # (T+1, 2H)
    bias_full = jnp.repeat(bias_plan, batch_pad, axis=0)              # ((T+1)*Bp, 2H)

    return {
        "T": T, "H": H, "C": C, "Bp": batch_pad,
        "wih0_ext": wih0_ext, "wc": wc, "wfc2": wfc2,
        "bias_full": bias_full, "b_fc": params["b_fc"].reshape(1, C),
    }


def rnn_forward(x, prep):
    """x: (B, T, D) batch-first, identical to nn.RNN(batch_first=True)."""
    B, T, D = x.shape
    Bp, C = prep["Bp"], prep["C"]
    assert T == prep["T"] and B <= Bp

    # Pad batch to the sublane tile, go time-major, and append one zero time
    # block so the epilogue step (which only produces h1_{T-1}) is uniform.
    x_p = jnp.zeros((T + 1, Bp, D), jnp.float32)
    x_p = x_p.at[:T, :B, :].set(jnp.transpose(x, (1, 0, 2)))
    x_ext = x_p.reshape((T + 1) * Bp, D)

    vspec = pl.BlockSpec(memory_space=pltpu.MemorySpace.VMEM)
    args = (x_ext, prep["wih0_ext"], prep["wc"], prep["bias_full"],
            prep["wfc2"], prep["b_fc"])
    out = pl.pallas_call(
        rnn_fc_kernel,
        out_shape=jax.ShapeDtypeStruct((Bp, C), jnp.float32),
        in_specs=[vspec] * len(args),
        out_specs=vspec,
    )(*args)
    return out[:B]


def init_params(key, input_size, hidden_size, seq_len, num_classes):
    """PyTorch-style uniform(-1/sqrt(fan), 1/sqrt(fan)) init, deterministic."""
    ks = jax.random.split(key, 12)
    kr = 1.0 / jnp.sqrt(hidden_size)             # nn.RNN bound
    kf = 1.0 / jnp.sqrt(hidden_size * seq_len)   # nn.Linear bound

    def u(k, shape, bound):
        return jax.random.uniform(k, shape, jnp.float32, -bound, bound)

    return {
        # RNN layer 0 (weights stored transposed: (in, out))
        "w_ih0": u(ks[0], (input_size, hidden_size), kr),
        "w_hh0": u(ks[1], (hidden_size, hidden_size), kr),
        "b_ih0": u(ks[2], (1, hidden_size), kr),
        "b_hh0": u(ks[3], (1, hidden_size), kr),
        # RNN layer 1
        "w_ih1": u(ks[4], (hidden_size, hidden_size), kr),
        "w_hh1": u(ks[5], (hidden_size, hidden_size), kr),
        "b_ih1": u(ks[6], (1, hidden_size), kr),
        "b_hh1": u(ks[7], (1, hidden_size), kr),
        # FC (transposed: (T*H, C))
        "w_fc": u(ks[8], (hidden_size * seq_len, num_classes), kf),
        "b_fc": u(ks[9], (1, num_classes), kf),
    }


def rnn_forward_ref(x, p):
    """Pure-JAX reference reproducing torch semantics, for verification."""
    B, T, D = x.shape
    H = p["w_hh0"].shape[0]
    h0 = jnp.zeros((B, H), jnp.float32)
    h1 = jnp.zeros((B, H), jnp.float32)
    outs = []
    for t in range(T):
        xt = x[:, t, :]
        h0 = jnp.tanh(xt @ p["w_ih0"] + p["b_ih0"] + h0 @ p["w_hh0"] + p["b_hh0"])
        h1 = jnp.tanh(h0 @ p["w_ih1"] + p["b_ih1"] + h1 @ p["w_hh1"] + p["b_hh1"])
        outs.append(h1)
    flat = jnp.stack(outs, axis=1).reshape(B, -1)
    return flat @ p["w_fc"] + p["b_fc"]


if __name__ == "__main__":
    # Small shapes consistent with the module's forward (batch, seq, feature).
    B, T, D, H, C = 2, 8, 16, 32, 10

    key = jax.random.PRNGKey(0)
    kx, kp = jax.random.split(key)
    x = jax.random.normal(kx, (B, T, D), jnp.float32)
    params = init_params(kp, D, H, T, C)

    prep = prepare_params(params, batch_pad=8)   # one-time packing
    out = jax.block_until_ready(rnn_forward(x, prep))

    ref = rnn_forward_ref(x, params)
    assert out.shape == (B, C)
    assert jnp.allclose(out, ref, atol=1e-4, rtol=1e-4), "mismatch vs JAX reference"

    print("KERNEL_OK")
</pallas_src>

<mosaic_0001>
module attributes {stable_mosaic.version = 11 : i64} {
  func.func @rnn_fc_kernel(%arg0: memref<72x16xf32, #tpu.memory_space<vmem>>, %arg1: memref<16x64xf32, #tpu.memory_space<vmem>>, %arg2: memref<64x64xf32, #tpu.memory_space<vmem>>, %arg3: memref<72x64xf32, #tpu.memory_space<vmem>>, %arg4: memref<512x10xf32, #tpu.memory_space<vmem>>, %arg5: memref<1x10xf32, #tpu.memory_space<vmem>>, %arg6: memref<8x10xf32, #tpu.memory_space<vmem>>) attributes {dimension_semantics = [], scalar_prefetch = 0 : i64, scratch_operands = 0 : i64, tpu.core_type = #tpu.core_type<tc>} {
    %c0 = arith.constant 0 : index
    %c0_0 = arith.constant 0 : index
    %0 = vector.load %arg0[%c0, %c0_0] : memref<72x16xf32, #tpu.memory_space<vmem>>, vector<72x16xf32>
    %c0_1 = arith.constant 0 : index
    %c0_2 = arith.constant 0 : index
    %1 = vector.load %arg1[%c0_1, %c0_2] : memref<16x64xf32, #tpu.memory_space<vmem>>, vector<16x64xf32>
    %cst = arith.constant dense<0.000000e+00> : vector<72x64xf32>
    %2 = tpu.matmul %0, %1, %cst {dimension_numbers = #tpu.dot_dimension_numbers<[1], [0], [0], [1], [0, 0, 1, 1], [], []>} : vector<72x16xf32>, vector<16x64xf32>, vector<72x64xf32> -> vector<72x64xf32>
    %c0_3 = arith.constant 0 : index
    %c0_4 = arith.constant 0 : index
    %3 = vector.load %arg3[%c0_3, %c0_4] : memref<72x64xf32, #tpu.memory_space<vmem>>, vector<72x64xf32>
    %4 = arith.addf %2, %3 : vector<72x64xf32>
    %c0_5 = arith.constant 0 : index
    %c0_6 = arith.constant 0 : index
    %5 = vector.load %arg2[%c0_5, %c0_6] : memref<64x64xf32, #tpu.memory_space<vmem>>, vector<64x64xf32>
    %c0_7 = arith.constant 0 : index
    %c0_8 = arith.constant 0 : index
    %6 = vector.load %arg5[%c0_7, %c0_8] : memref<1x10xf32, #tpu.memory_space<vmem>>, vector<1x10xf32>
    %7 = vector.shape_cast %6 : vector<1x10xf32> to vector<1x10xf32>
    %8 = vector.broadcast %7 : vector<1x10xf32> to vector<8x10xf32>
    %9 = vector.extract_strided_slice %4 {offsets = [0, 0], sizes = [8, 64], strides = [1, 1]} : vector<72x64xf32> to vector<8x64xf32>
    %10 = math.tanh %9 : vector<8x64xf32>
    %11 = vector.extract_strided_slice %4 {offsets = [8, 0], sizes = [8, 64], strides = [1, 1]} : vector<72x64xf32> to vector<8x64xf32>
    %cst_9 = arith.constant dense<0.000000e+00> : vector<8x64xf32>
    %12 = tpu.matmul %10, %5, %cst_9 {dimension_numbers = #tpu.dot_dimension_numbers<[1], [0], [0], [1], [0, 0, 1, 1], [], []>} : vector<8x64xf32>, vector<64x64xf32>, vector<8x64xf32> -> vector<8x64xf32>
    %13 = arith.addf %11, %12 : vector<8x64xf32>
    %14 = math.tanh %13 : vector<8x64xf32>
    %c0_10 = arith.constant 0 : index
    %c0_11 = arith.constant 0 : index
    %15 = vector.load %arg4[%c0_10, %c0_11] : memref<512x10xf32, #tpu.memory_space<vmem>>, vector<64x10xf32>
    %cst_12 = arith.constant dense<0.000000e+00> : vector<8x10xf32>
    %16 = tpu.matmul %14, %15, %cst_12 {dimension_numbers = #tpu.dot_dimension_numbers<[1], [0], [0], [1], [0, 0, 1, 1], [], []>} : vector<8x64xf32>, vector<64x10xf32>, vector<8x10xf32> -> vector<8x10xf32>
    %17 = arith.addf %8, %16 : vector<8x10xf32>
    %18 = vector.extract_strided_slice %4 {offsets = [16, 0], sizes = [8, 64], strides = [1, 1]} : vector<72x64xf32> to vector<8x64xf32>
    %cst_13 = arith.constant dense<0.000000e+00> : vector<8x64xf32>
    %19 = tpu.matmul %14, %5, %cst_13 {dimension_numbers = #tpu.dot_dimension_numbers<[1], [0], [0], [1], [0, 0, 1, 1], [], []>} : vector<8x64xf32>, vector<64x64xf32>, vector<8x64xf32> -> vector<8x64xf32>
    %20 = arith.addf %18, %19 : vector<8x64xf32>
    %21 = math.tanh %20 : vector<8x64xf32>
    %c64 = arith.constant 64 : index
    %c0_14 = arith.constant 0 : index
    %22 = vector.load %arg4[%c64, %c0_14] : memref<512x10xf32, #tpu.memory_space<vmem>>, vector<64x10xf32>
    %cst_15 = arith.constant dense<0.000000e+00> : vector<8x10xf32>
    %23 = tpu.matmul %21, %22, %cst_15 {dimension_numbers = #tpu.dot_dimension_numbers<[1], [0], [0], [1], [0, 0, 1, 1], [], []>} : vector<8x64xf32>, vector<64x10xf32>, vector<8x10xf32> -> vector<8x10xf32>
    %24 = arith.addf %17, %23 : vector<8x10xf32>
    %25 = vector.extract_strided_slice %4 {offsets = [24, 0], sizes = [8, 64], strides = [1, 1]} : vector<72x64xf32> to vector<8x64xf32>
    %cst_16 = arith.constant dense<0.000000e+00> : vector<8x64xf32>
    %26 = tpu.matmul %21, %5, %cst_16 {dimension_numbers = #tpu.dot_dimension_numbers<[1], [0], [0], [1], [0, 0, 1, 1], [], []>} : vector<8x64xf32>, vector<64x64xf32>, vector<8x64xf32> -> vector<8x64xf32>
    %27 = arith.addf %25, %26 : vector<8x64xf32>
    %28 = math.tanh %27 : vector<8x64xf32>
    %c128 = arith.constant 128 : index
    %c0_17 = arith.constant 0 : index
    %29 = vector.load %arg4[%c128, %c0_17] : memref<512x10xf32, #tpu.memory_space<vmem>>, vector<64x10xf32>
    %cst_18 = arith.constant dense<0.000000e+00> : vector<8x10xf32>
    %30 = tpu.matmul %28, %29, %cst_18 {dimension_numbers = #tpu.dot_dimension_numbers<[1], [0], [0], [1], [0, 0, 1, 1], [], []>} : vector<8x64xf32>, vector<64x10xf32>, vector<8x10xf32> -> vector<8x10xf32>
    %31 = arith.addf %24, %30 : vector<8x10xf32>
    %32 = vector.extract_strided_slice %4 {offsets = [32, 0], sizes = [8, 64], strides = [1, 1]} : vector<72x64xf32> to vector<8x64xf32>
    %cst_19 = arith.constant dense<0.000000e+00> : vector<8x64xf32>
    %33 = tpu.matmul %28, %5, %cst_19 {dimension_numbers = #tpu.dot_dimension_numbers<[1], [0], [0], [1], [0, 0, 1, 1], [], []>} : vector<8x64xf32>, vector<64x64xf32>, vector<8x64xf32> -> vector<8x64xf32>
    %34 = arith.addf %32, %33 : vector<8x64xf32>
    %35 = math.tanh %34 : vector<8x64xf32>
    %c192 = arith.constant 192 : index
    %c0_20 = arith.constant 0 : index
    %36 = vector.load %arg4[%c192, %c0_20] : memref<512x10xf32, #tpu.memory_space<vmem>>, vector<64x10xf32>
    %cst_21 = arith.constant dense<0.000000e+00> : vector<8x10xf32>
    %37 = tpu.matmul %35, %36, %cst_21 {dimension_numbers = #tpu.dot_dimension_numbers<[1], [0], [0], [1], [0, 0, 1, 1], [], []>} : vector<8x64xf32>, vector<64x10xf32>, vector<8x10xf32> -> vector<8x10xf32>
    %38 = arith.addf %31, %37 : vector<8x10xf32>
    %39 = vector.extract_strided_slice %4 {offsets = [40, 0], sizes = [8, 64], strides = [1, 1]} : vector<72x64xf32> to vector<8x64xf32>
    %cst_22 = arith.constant dense<0.000000e+00> : vector<8x64xf32>
    %40 = tpu.matmul %35, %5, %cst_22 {dimension_numbers = #tpu.dot_dimension_numbers<[1], [0], [0], [1], [0, 0, 1, 1], [], []>} : vector<8x64xf32>, vector<64x64xf32>, vector<8x64xf32> -> vector<8x64xf32>
    %41 = arith.addf %39, %40 : vector<8x64xf32>
    %42 = math.tanh %41 : vector<8x64xf32>
    %c256 = arith.constant 256 : index
    %c0_23 = arith.constant 0 : index
    %43 = vector.load %arg4[%c256, %c0_23] : memref<512x10xf32, #tpu.memory_space<vmem>>, vector<64x10xf32>
    %cst_24 = arith.constant dense<0.000000e+00> : vector<8x10xf32>
    %44 = tpu.matmul %42, %43, %cst_24 {dimension_numbers = #tpu.dot_dimension_numbers<[1], [0], [0], [1], [0, 0, 1, 1], [], []>} : vector<8x64xf32>, vector<64x10xf32>, vector<8x10xf32> -> vector<8x10xf32>
    %45 = arith.addf %38, %44 : vector<8x10xf32>
    %46 = vector.extract_strided_slice %4 {offsets = [48, 0], sizes = [8, 64], strides = [1, 1]} : vector<72x64xf32> to vector<8x64xf32>
    %cst_25 = arith.constant dense<0.000000e+00> : vector<8x64xf32>
    %47 = tpu.matmul %42, %5, %cst_25 {dimension_numbers = #tpu.dot_dimension_numbers<[1], [0], [0], [1], [0, 0, 1, 1], [], []>} : vector<8x64xf32>, vector<64x64xf32>, vector<8x64xf32> -> vector<8x64xf32>
    %48 = arith.addf %46, %47 : vector<8x64xf32>
    %49 = math.tanh %48 : vector<8x64xf32>
    %c320 = arith.constant 320 : index
    %c0_26 = arith.constant 0 : index
    %50 = vector.load %arg4[%c320, %c0_26] : memref<512x10xf32, #tpu.memory_space<vmem>>, vector<64x10xf32>
    %cst_27 = arith.constant dense<0.000000e+00> : vector<8x10xf32>
    %51 = tpu.matmul %49, %50, %cst_27 {dimension_numbers = #tpu.dot_dimension_numbers<[1], [0], [0], [1], [0, 0, 1, 1], [], []>} : vector<8x64xf32>, vector<64x10xf32>, vector<8x10xf32> -> vector<8x10xf32>
    %52 = arith.addf %45, %51 : vector<8x10xf32>
    %53 = vector.extract_strided_slice %4 {offsets = [56, 0], sizes = [8, 64], strides = [1, 1]} : vector<72x64xf32> to vector<8x64xf32>
    %cst_28 = arith.constant dense<0.000000e+00> : vector<8x64xf32>
    %54 = tpu.matmul %49, %5, %cst_28 {dimension_numbers = #tpu.dot_dimension_numbers<[1], [0], [0], [1], [0, 0, 1, 1], [], []>} : vector<8x64xf32>, vector<64x64xf32>, vector<8x64xf32> -> vector<8x64xf32>
    %55 = arith.addf %53, %54 : vector<8x64xf32>
    %56 = math.tanh %55 : vector<8x64xf32>
    %c384 = arith.constant 384 : index
    %c0_29 = arith.constant 0 : index
    %57 = vector.load %arg4[%c384, %c0_29] : memref<512x10xf32, #tpu.memory_space<vmem>>, vector<64x10xf32>
    %cst_30 = arith.constant dense<0.000000e+00> : vector<8x10xf32>
    %58 = tpu.matmul %56, %57, %cst_30 {dimension_numbers = #tpu.dot_dimension_numbers<[1], [0], [0], [1], [0, 0, 1, 1], [], []>} : vector<8x64xf32>, vector<64x10xf32>, vector<8x10xf32> -> vector<8x10xf32>
    %59 = arith.addf %52, %58 : vector<8x10xf32>
    %60 = vector.extract_strided_slice %4 {offsets = [64, 0], sizes = [8, 64], strides = [1, 1]} : vector<72x64xf32> to vector<8x64xf32>
    %cst_31 = arith.constant dense<0.000000e+00> : vector<8x64xf32>
    %61 = tpu.matmul %56, %5, %cst_31 {dimension_numbers = #tpu.dot_dimension_numbers<[1], [0], [0], [1], [0, 0, 1, 1], [], []>} : vector<8x64xf32>, vector<64x64xf32>, vector<8x64xf32> -> vector<8x64xf32>
    %62 = arith.addf %60, %61 : vector<8x64xf32>
    %63 = math.tanh %62 : vector<8x64xf32>
    %c448 = arith.constant 448 : index
    %c0_32 = arith.constant 0 : index
    %64 = vector.load %arg4[%c448, %c0_32] : memref<512x10xf32, #tpu.memory_space<vmem>>, vector<64x10xf32>
    %cst_33 = arith.constant dense<0.000000e+00> : vector<8x10xf32>
    %65 = tpu.matmul %63, %64, %cst_33 {dimension_numbers = #tpu.dot_dimension_numbers<[1], [0], [0], [1], [0, 0, 1, 1], [], []>} : vector<8x64xf32>, vector<64x10xf32>, vector<8x10xf32> -> vector<8x10xf32>
    %66 = arith.addf %59, %65 : vector<8x10xf32>
    %c0_34 = arith.constant 0 : index
    %c0_35 = arith.constant 0 : index
    %67 = vector.load %arg6[%c0_34, %c0_35] : memref<8x10xf32, #tpu.memory_space<vmem>>, vector<8x10xf32>
    tpu.vector_store %arg6[%c0_34, %c0_35], %66 {strides = array<i32>} : memref<8x10xf32, #tpu.memory_space<vmem>>, vector<8x10xf32>,
    return
  }
}

</mosaic_0001>

<llo_original>
// kernel: tpu_custom_call.1
$region0: #{tpu_custom_call.1}
  #allocation0 [shape = 'u32[]', space=smem, size = 0x4, offset = 0x4, fixed_abs, tag = 'smem constant byte address 0x4 - core index']
  #allocation1 [shape = 'u32[144,128]{1,0:T(1,128)}', space=vmem, size = 0x12000, scoped, tag = 'internal scratch']
  %s0 = inlined_call_operand.vmem [shape: f32[72,16], index: 0, kind: input, shape index: {}]
  %s1 = inlined_call_operand.vmem [shape: f32[16,64], index: 1, kind: input, shape index: {}]
  %s2 = inlined_call_operand.vmem [shape: f32[64,64], index: 2, kind: input, shape index: {}]
  %s3 = inlined_call_operand.vmem [shape: f32[72,64], index: 3, kind: input, shape index: {}]
  %s4 = inlined_call_operand.vmem [shape: f32[512,10], index: 4, kind: input, shape index: {}]
  %s5 = inlined_call_operand.vmem [shape: f32[1,10], index: 5, kind: input, shape index: {}]
  %s6 = inlined_call_operand.hbm [shape: f32[8,10], index: 6, kind: output, shape index: {}]
  %s7 = sld [smem:[#allocation0]]
  $region34: #{tpu_custom_call.1} parent=0
    _
  %s9 = ssub.s32 1, %s7
  %s10 = scalar_select 0, %s9, %s7
  $region1: #{tpu_custom_call.1} parent=0
    #allocation2 [shape = 'u8[4096]{0}', space=vmem, size = 0x1000, scoped, tag = 'output window, operand 0, single buffered']
    #allocation3 [shape = 's32[1]{0}', space=sflag, size = 0x4, scoped, tag = 'scoped memory for tpu_custom_call.1']
    %11 = vsyncpa [#allocation3], 0
    // Predicated region
    $region2: #{tpu_custom_call.1} parent=1 // pred_check
      _
    $region3: #{tpu_custom_call.1} parent=1 // pred_check_branch
      %13 = sbr.rel (0) target = $region5
    $region4: #{tpu_custom_call.1} parent=1 // pred_region
      _
    $region5: #{tpu_custom_call.1} parent=1 // pred_fallthru
      _
    // Predicated region
    $region6: #{tpu_custom_call.1} parent=1 // pred_check
      _
    $region7: #{tpu_custom_call.1} parent=1 // pred_check_branch
      %15 = sbr.rel (0) target = $region9
    $region8: #{tpu_custom_call.1} parent=1 // pred_region
      _
    $region9: #{tpu_custom_call.1} parent=1 // pred_fallthru
      _
    // Predicated region
    $region10: #{tpu_custom_call.1} parent=1 // pred_check
      _
    $region11: #{tpu_custom_call.1} parent=1 // pred_check_branch
      %17 = sbr.rel (0) target = $region13
    $region12: #{tpu_custom_call.1} parent=1 // pred_region
      _
    $region13: #{tpu_custom_call.1} parent=1 // pred_fallthru
      _
    // Predicated region
    $region14: #{tpu_custom_call.1} parent=1 // pred_check
      _
    $region15: #{tpu_custom_call.1} parent=1 // pred_check_branch
      %19 = sbr.rel (0) target = $region17
    $region16: #{tpu_custom_call.1} parent=1 // pred_region
      _
    $region17: #{tpu_custom_call.1} parent=1 // pred_fallthru
      _
    // Predicated region
    $region18: #{tpu_custom_call.1} parent=1 // pred_check
      _
    $region19: #{tpu_custom_call.1} parent=1 // pred_check_branch
      %21 = sbr.rel (0) target = $region21
    $region20: #{tpu_custom_call.1} parent=1 // pred_region
      _
    $region21: #{tpu_custom_call.1} parent=1 // pred_fallthru
      _
    // Predicated region
    $region22: #{tpu_custom_call.1} parent=1 // pred_check
      _
    $region23: #{tpu_custom_call.1} parent=1 // pred_check_branch
      %23 = sbr.rel (0) target = $region25
    $region24: #{tpu_custom_call.1} parent=1 // pred_region
      _
    $region25: #{tpu_custom_call.1} parent=1 // pred_fallthru
      _
    %v24 = vld [vmem:[%s0] sm:$0xff]
    %v25 = vld [vmem:[%s0 + $0x8] sm:$0xff]
    %v26 = vld [vmem:[%s0 + $0x10] sm:$0xff]
    %v27 = vld [vmem:[%s0 + $0x18] sm:$0xff]
    %v28 = vld [vmem:[%s0 + $0x20] sm:$0xff]
    %v29 = vld [vmem:[%s0 + $0x28] sm:$0xff]
    %v30 = vld [vmem:[%s0 + $0x30] sm:$0xff]
    %v31 = vld [vmem:[%s0 + $0x38] sm:$0xff]
    %v32 = vld [vmem:[%s0 + $0x40] sm:$0xff]
    %v33 = vld [vmem:[%s1] sm:$0xff]
    %v34 = vld [vmem:[%s1 + $0x8] sm:$0xff]
    %v35 = vld [vmem:[%s3] sm:$0xff]
    %v36 = vld [vmem:[%s3 + $0x8] sm:$0xff]
    %v37 = vld [vmem:[%s3 + $0x10] sm:$0xff]
    %v38 = vld [vmem:[%s3 + $0x18] sm:$0xff]
    %v39 = vld [vmem:[%s3 + $0x20] sm:$0xff]
    %v40 = vld [vmem:[%s3 + $0x28] sm:$0xff]
    %v41 = vld [vmem:[%s3 + $0x30] sm:$0xff]
    %v42 = vld [vmem:[%s3 + $0x38] sm:$0xff]
    %v43 = vld [vmem:[%s3 + $0x40] sm:$0xff]
    %vm44 = vcmask 130048
    %v46 = vsel %vm44, %v24, 0
    %v49 = vsel %vm44, %v25, 0
    %v52 = vsel %vm44, %v26, 0
    %v55 = vsel %vm44, %v27, 0
    %v58 = vsel %vm44, %v28, 0
    %v61 = vsel %vm44, %v29, 0
    %v64 = vsel %vm44, %v30, 0
    %v67 = vsel %vm44, %v31, 0
    %v70 = vsel %vm44, %v32, 0
    %72 = vmatprep.subr.mxu0 0.0
    %73 = vmatpush1.msra.mxu0 %v33
    %74 = vmatprep.subr.mxu0 0.0
    %75 = vmatpush1.msra.mxu0 %v34
    %76 = vmatprep.subr.mxu0 0.0
    %77 = vmatpush1.msra.mxu0 0.0
    %78 = vmatprep.subr.mxu0 0.0
    %79 = vmatpush1.msra.mxu0 0.0
    %80 = vmatprep.subr.mxu0 0.0
    %81 = vmatpush1.msra.mxu0 0.0
    %82 = vmatprep.subr.mxu0 0.0
    %83 = vmatpush1.msra.mxu0 0.0
    %84 = vmatprep.subr.mxu0 0.0
    %85 = vmatpush1.msra.mxu0 0.0
    %86 = vmatprep.subr.mxu0 0.0
    %87 = vmatpush1.msra.mxu0 0.0
    %88 = vmatprep.subr.mxu0 0.0
    %89 = vmatpush1.msra.mxu0 0.0
    %90 = vmatprep.subr.mxu0 0.0
    %91 = vmatpush1.msra.mxu0 0.0
    %92 = vmatprep.subr.mxu0 0.0
    %93 = vmatpush1.msra.mxu0 0.0
    %94 = vmatprep.subr.mxu0 0.0
    %95 = vmatpush1.msra.mxu0 0.0
    %96 = vmatprep.subr.mxu0 0.0
    %97 = vmatpush1.msra.mxu0 0.0
    %98 = vmatprep.subr.mxu0 0.0
    %99 = vmatpush1.msra.mxu0 0.0
    %100 = vmatprep.subr.mxu0 0.0
    %101 = vmatpush1.msra.mxu0 0.0
    %102 = vmatprep.subr.mxu0 0.0
    %103 = vmatpush1.msra.mxu0 0.0
    %104 = vmatprep.subr.mxu0 0.0
    %105 = vmatpush1.msra.mxu0 0.0
    %106 = vmatprep.subr.mxu0 0.0
    %107 = vmatpush1.msra.mxu0 0.0
    %108 = vmatprep.subr.mxu0 0.0
    %109 = vmatpush1.msra.mxu0 0.0
    %110 = vmatprep.subr.mxu0 0.0
    %111 = vmatpush1.msra.mxu0 0.0
    %112 = vmatprep.subr.mxu0 0.0
    %113 = vmatpush1.msra.mxu0 0.0
    %114 = vmatprep.subr.mxu0 0.0
    %115 = vmatpush1.msra.mxu0 0.0
    %116 = vmatprep.subr.mxu0 0.0
    %117 = vmatpush1.msra.mxu0 0.0
    %118 = vmatprep.subr.mxu0 0.0
    %119 = vmatpush1.msra.mxu0 0.0
    %120 = vmatprep.subr.mxu0 0.0
    %121 = vmatpush1.msra.mxu0 0.0
    %122 = vmatprep.subr.mxu0 0.0
    %123 = vmatpush1.msra.mxu0 0.0
    %124 = vmatprep.subr.mxu0 0.0
    %125 = vmatpush1.msra.mxu0 0.0
    %126 = vmatprep.subr.mxu0 0.0
    %127 = vmatpush1.msra.mxu0 0.0
    %128 = vmatprep.subr.mxu0 0.0
    %129 = vmatpush1.msra.mxu0 0.0
    %130 = vmatprep.subr.mxu0 0.0
    %131 = vmatpush1.msra.mxu0 0.0
    %132 = vmatprep.subr.mxu0 0.0
    %133 = vmatpush1.msra.mxu0 0.0
    %134 = vmatprep.subr.mxu0 0.0
    %135 = vmatpush1.msra.mxu0 0.0
    %136 = vmatprep.mubr.f32.mxu0 0.0
    %137 = vmatmul.mubr.f32.gmra.mrb[0].mxu0 %v46
    %v138 = vpop.f32.mrb[0].mxu0
    %v139 = vadd.f32 %v35, %v138
    %v140 = vpop.f32.mrb[0].mxu0
    %141 = vmatprep.mubr.f32.mxu0 0.0
    %142 = vmatmul.mubr.f32.gmra.mrb[0].mxu0 %v49
    %v143 = vpop.f32.mrb[0].mxu0
    %v144 = vadd.f32 %v36, %v143
    %v145 = vpop.f32.mrb[0].mxu0
    %146 = vmatprep.mubr.f32.mxu0 0.0
    %147 = vmatmul.mubr.f32.gmra.mrb[0].mxu0 %v52
    %v148 = vpop.f32.mrb[0].mxu0
    %v149 = vadd.f32 %v37, %v148
    %v150 = vpop.f32.mrb[0].mxu0
    %151 = vmatprep.mubr.f32.mxu0 0.0
    %152 = vmatmul.mubr.f32.gmra.mrb[0].mxu0 %v55
    %v153 = vpop.f32.mrb[0].mxu0
    %v154 = vadd.f32 %v38, %v153
    %v155 = vpop.f32.mrb[0].mxu0
    %156 = vmatprep.mubr.f32.mxu0 0.0
    %157 = vmatmul.mubr.f32.gmra.mrb[0].mxu0 %v58
    %v158 = vpop.f32.mrb[0].mxu0
    %v159 = vadd.f32 %v39, %v158
    %v160 = vpop.f32.mrb[0].mxu0
    %161 = vmatprep.mubr.f32.mxu0 0.0
    %162 = vmatmul.mubr.f32.gmra.mrb[0].mxu0 %v61
    %v163 = vpop.f32.mrb[0].mxu0
    %v164 = vadd.f32 %v40, %v163
    %v165 = vpop.f32.mrb[0].mxu0
    %166 = vmatprep.mubr.f32.mxu0 0.0
    %167 = vmatmul.mubr.f32.gmra.mrb[0].mxu0 %v64
    %v168 = vpop.f32.mrb[0].mxu0
    %v169 = vadd.f32 %v41, %v168
    %v170 = vpop.f32.mrb[0].mxu0
    %171 = vmatprep.mubr.f32.mxu0 0.0
    %172 = vmatmul.mubr.f32.gmra.mrb[0].mxu0 %v67
    %v173 = vpop.f32.mrb[0].mxu0
    %v174 = vadd.f32 %v42, %v173
    %v175 = vpop.f32.mrb[0].mxu0
    %176 = vmatprep.mubr.f32.mxu0 0.0
    %177 = vmatmul.mubr.f32.gmra.mrb[0].mxu0 %v70
    %v178 = vpop.f32.mrb[0].mxu0
    %v179 = vadd.f32 %v43, %v178
    %v180 = vpop.f32.mrb[0].mxu0
    %181 = vdwg.mxu0
    %v182 = vld [vmem:[%s2] sm:$0xff]
    %v183 = vld [vmem:[%s2 + $0x8] sm:$0xff]
    %v184 = vld [vmem:[%s2 + $0x10] sm:$0xff]
    %v185 = vld [vmem:[%s2 + $0x18] sm:$0xff]
    %v186 = vld [vmem:[%s2 + $0x20] sm:$0xff]
    %v187 = vld [vmem:[%s2 + $0x28] sm:$0xff]
    %v188 = vld [vmem:[%s2 + $0x30] sm:$0xff]
    %v189 = vld [vmem:[%s2 + $0x38] sm:$0xff]
    %v190 = vld [vmem:[%s5] sm:$0x1]
    %v192 = vlaneseq
    %v193 = vshrl.u32 %v192, 7
    %v194 = vsub.s32 0, %v193
    %v195 = vrot.slane %v190, %v194
    %v197 = vtanh.pop %v139
    %vm198 = vcmask 523264
    %v200 = vsel %vm198, %v197, 0
    %202 = vmatprep.subr.mxu0 0.0
    %203 = vmatpush1.msra.mxu0 %v182
    %204 = vmatprep.subr.mxu0 0.0
    %205 = vmatpush1.msra.mxu0 %v183
    %206 = vmatprep.subr.mxu0 0.0
    %207 = vmatpush1.msra.mxu0 %v184
    %208 = vmatprep.subr.mxu0 0.0
    %209 = vmatpush1.msra.mxu0 %v185
    %210 = vmatprep.subr.mxu0 0.0
    %211 = vmatpush1.msra.mxu0 %v186
    %212 = vmatprep.subr.mxu0 0.0
    %213 = vmatpush1.msra.mxu0 %v187
    %214 = vmatprep.subr.mxu0 0.0
    %215 = vmatpush1.msra.mxu0 %v188
    %216 = vmatprep.subr.mxu0 0.0
    %217 = vmatpush1.msra.mxu0 %v189
    %218 = vmatprep.subr.mxu0 0.0
    %219 = vmatpush1.msra.mxu0 0.0
    %220 = vmatprep.subr.mxu0 0.0
    %221 = vmatpush1.msra.mxu0 0.0
    %222 = vmatprep.subr.mxu0 0.0
    %223 = vmatpush1.msra.mxu0 0.0
    %224 = vmatprep.subr.mxu0 0.0
    %225 = vmatpush1.msra.mxu0 0.0
    %226 = vmatprep.subr.mxu0 0.0
    %227 = vmatpush1.msra.mxu0 0.0
    %228 = vmatprep.subr.mxu0 0.0
    %229 = vmatpush1.msra.mxu0 0.0
    %230 = vmatprep.subr.mxu0 0.0
    %231 = vmatpush1.msra.mxu0 0.0
    %232 = vmatprep.subr.mxu0 0.0
    %233 = vmatpush1.msra.mxu0 0.0
    %234 = vmatprep.subr.mxu0 0.0
    %235 = vmatpush1.msra.mxu0 0.0
    %236 = vmatprep.subr.mxu0 0.0
    %237 = vmatpush1.msra.mxu0 0.0
    %238 = vmatprep.subr.mxu0 0.0
    %239 = vmatpush1.msra.mxu0 0.0
    %240 = vmatprep.subr.mxu0 0.0
    %241 = vmatpush1.msra.mxu0 0.0
    %242 = vmatprep.subr.mxu0 0.0
    %243 = vmatpush1.msra.mxu0 0.0
    %244 = vmatprep.subr.mxu0 0.0
    %245 = vmatpush1.msra.mxu0 0.0
    %246 = vmatprep.subr.mxu0 0.0
    %247 = vmatpush1.msra.mxu0 0.0
    %248 = vmatprep.subr.mxu0 0.0
    %249 = vmatpush1.msra.mxu0 0.0
    %250 = vmatprep.subr.mxu0 0.0
    %251 = vmatpush1.msra.mxu0 0.0
    %252 = vmatprep.subr.mxu0 0.0
    %253 = vmatpush1.msra.mxu0 0.0
    %254 = vmatprep.subr.mxu0 0.0
    %255 = vmatpush1.msra.mxu0 0.0
    %256 = vmatprep.subr.mxu0 0.0
    %257 = vmatpush1.msra.mxu0 0.0
    %258 = vmatprep.subr.mxu0 0.0
    %259 = vmatpush1.msra.mxu0 0.0
    %260 = vmatprep.subr.mxu0 0.0
    %261 = vmatpush1.msra.mxu0 0.0
    %262 = vmatprep.subr.mxu0 0.0
    %263 = vmatpush1.msra.mxu0 0.0
    %264 = vmatprep.subr.mxu0 0.0
    %265 = vmatpush1.msra.mxu0 0.0
    %266 = vmatprep.mubr.f32.mxu0 0.0
    %267 = vmatmul.mubr.f32.gmra.mrb[0].mxu0 %v200
    %v268 = vpop.f32.mrb[0].mxu0
    %v269 = vadd.f32 0.0, %v268
    %v270 = vpop.f32.mrb[0].mxu0
    %271 = vdwg.mxu0
    %v272 = vadd.f32 %v144, %v269
    %v273 = vtanh.pop %v272
    %v274 = vld [vmem:[%s4] sm:$0xff]
    %v275 = vld [vmem:[%s4 + $0x8] sm:$0xff]
    %v276 = vld [vmem:[%s4 + $0x10] sm:$0xff]
    %v277 = vld [vmem:[%s4 + $0x18] sm:$0xff]
    %v278 = vld [vmem:[%s4 + $0x20] sm:$0xff]
    %v279 = vld [vmem:[%s4 + $0x28] sm:$0xff]
    %v280 = vld [vmem:[%s4 + $0x30] sm:$0xff]
    %v281 = vld [vmem:[%s4 + $0x38] sm:$0xff]
    %v283 = vsel %vm198, %v273, 0
    %285 = vmatprep.subr.mxu0 0.0
    %286 = vmatpush1.msra.mxu0 %v274
    %287 = vmatprep.subr.mxu0 0.0
    %288 = vmatpush1.msra.mxu0 %v275
    %289 = vmatprep.subr.mxu0 0.0
    %290 = vmatpush1.msra.mxu0 %v276
    %291 = vmatprep.subr.mxu0 0.0
    %292 = vmatpush1.msra.mxu0 %v277
    %293 = vmatprep.subr.mxu0 0.0
    %294 = vmatpush1.msra.mxu0 %v278
    %295 = vmatprep.subr.mxu0 0.0
    %296 = vmatpush1.msra.mxu0 %v279
    %297 = vmatprep.subr.mxu0 0.0
    %298 = vmatpush1.msra.mxu0 %v280
    %299 = vmatprep.subr.mxu0 0.0
    %300 = vmatpush1.msra.mxu0 %v281
    %301 = vmatprep.subr.mxu0 0.0
    %302 = vmatpush1.msra.mxu0 0.0
    %303 = vmatprep.subr.mxu0 0.0
    %304 = vmatpush1.msra.mxu0 0.0
    %305 = vmatprep.subr.mxu0 0.0
    %306 = vmatpush1.msra.mxu0 0.0
    %307 = vmatprep.subr.mxu0 0.0
    %308 = vmatpush1.msra.mxu0 0.0
    %309 = vmatprep.subr.mxu0 0.0
    %310 = vmatpush1.msra.mxu0 0.0
    %311 = vmatprep.subr.mxu0 0.0
    %312 = vmatpush1.msra.mxu0 0.0
    %313 = vmatprep.subr.mxu0 0.0
    %314 = vmatpush1.msra.mxu0 0.0
    %315 = vmatprep.subr.mxu0 0.0
    %316 = vmatpush1.msra.mxu0 0.0
    %317 = vmatprep.subr.mxu0 0.0
    %318 = vmatpush1.msra.mxu0 0.0
    %319 = vmatprep.subr.mxu0 0.0
    %320 = vmatpush1.msra.mxu0 0.0
    %321 = vmatprep.subr.mxu0 0.0
    %322 = vmatpush1.msra.mxu0 0.0
    %323 = vmatprep.subr.mxu0 0.0
    %324 = vmatpush1.msra.mxu0 0.0
    %325 = vmatprep.subr.mxu0 0.0
    %326 = vmatpush1.msra.mxu0 0.0
    %327 = vmatprep.subr.mxu0 0.0
    %328 = vmatpush1.msra.mxu0 0.0
    %329 = vmatprep.subr.mxu0 0.0
    %330 = vmatpush1.msra.mxu0 0.0
    %331 = vmatprep.subr.mxu0 0.0
    %332 = vmatpush1.msra.mxu0 0.0
    %333 = vmatprep.subr.mxu0 0.0
    %334 = vmatpush1.msra.mxu0 0.0
    %335 = vmatprep.subr.mxu0 0.0
    %336 = vmatpush1.msra.mxu0 0.0
    %337 = vmatprep.subr.mxu0 0.0
    %338 = vmatpush1.msra.mxu0 0.0
    %339 = vmatprep.subr.mxu0 0.0
    %340 = vmatpush1.msra.mxu0 0.0
    %341 = vmatprep.subr.mxu0 0.0
    %342 = vmatpush1.msra.mxu0 0.0
    %343 = vmatprep.subr.mxu0 0.0
    %344 = vmatpush1.msra.mxu0 0.0
    %345 = vmatprep.subr.mxu0 0.0
    %346 = vmatpush1.msra.mxu0 0.0
    %347 = vmatprep.subr.mxu0 0.0
    %348 = vmatpush1.msra.mxu0 0.0
    %349 = vmatprep.mubr.f32.mxu0 0.0
    %350 = vmatmul.mubr.f32.gmra.mrb[0].mxu0 %v283
    %v351 = vpop.f32.mrb[0].mxu0
    %v352 = vadd.f32 0.0, %v351
    %v353 = vpop.f32.mrb[0].mxu0
    %354 = vdwg.mxu0
    %v355 = vadd.f32 %v195, %v352
    %356 = vmatprep.subr.mxu0 0.0
    %357 = vmatpush1.msra.mxu0 %v182
    %358 = vmatprep.subr.mxu0 0.0
    %359 = vmatpush1.msra.mxu0 %v183
    %360 = vmatprep.subr.mxu0 0.0
    %361 = vmatpush1.msra.mxu0 %v184
    %362 = vmatprep.subr.mxu0 0.0
    %363 = vmatpush1.msra.mxu0 %v185
    %364 = vmatprep.subr.mxu0 0.0
    %365 = vmatpush1.msra.mxu0 %v186
    %366 = vmatprep.subr.mxu0 0.0
    %367 = vmatpush1.msra.mxu0 %v187
    %368 = vmatprep.subr.mxu0 0.0
    %369 = vmatpush1.msra.mxu0 %v188
    %370 = vmatprep.subr.mxu0 0.0
    %371 = vmatpush1.msra.mxu0 %v189
    %372 = vmatprep.subr.mxu0 0.0
    %373 = vmatpush1.msra.mxu0 0.0
    %374 = vmatprep.subr.mxu0 0.0
    %375 = vmatpush1.msra.mxu0 0.0
    %376 = vmatprep.subr.mxu0 0.0
    %377 = vmatpush1.msra.mxu0 0.0
    %378 = vmatprep.subr.mxu0 0.0
    %379 = vmatpush1.msra.mxu0 0.0
    %380 = vmatprep.subr.mxu0 0.0
    %381 = vmatpush1.msra.mxu0 0.0
    %382 = vmatprep.subr.mxu0 0.0
    %383 = vmatpush1.msra.mxu0 0.0
    %384 = vmatprep.subr.mxu0 0.0
    %385 = vmatpush1.msra.mxu0 0.0
    %386 = vmatprep.subr.mxu0 0.0
    %387 = vmatpush1.msra.mxu0 0.0
    %388 = vmatprep.subr.mxu0 0.0
    %389 = vmatpush1.msra.mxu0 0.0
    %390 = vmatprep.subr.mxu0 0.0
    %391 = vmatpush1.msra.mxu0 0.0
    %392 = vmatprep.subr.mxu0 0.0
    %393 = vmatpush1.msra.mxu0 0.0
    %394 = vmatprep.subr.mxu0 0.0
    %395 = vmatpush1.msra.mxu0 0.0
    %396 = vmatprep.subr.mxu0 0.0
    %397 = vmatpush1.msra.mxu0 0.0
    %398 = vmatprep.subr.mxu0 0.0
    %399 = vmatpush1.msra.mxu0 0.0
    %400 = vmatprep.subr.mxu0 0.0
    %401 = vmatpush1.msra.mxu0 0.0
    %402 = vmatprep.subr.mxu0 0.0
    %403 = vmatpush1.msra.mxu0 0.0
    %404 = vmatprep.subr.mxu0 0.0
    %405 = vmatpush1.msra.mxu0 0.0
    %406 = vmatprep.subr.mxu0 0.0
    %407 = vmatpush1.msra.mxu0 0.0
    %408 = vmatprep.subr.mxu0 0.0
    %409 = vmatpush1.msra.mxu0 0.0
    %410 = vmatprep.subr.mxu0 0.0
    %411 = vmatpush1.msra.mxu0 0.0
    %412 = vmatprep.subr.mxu0 0.0
    %413 = vmatpush1.msra.mxu0 0.0
    %414 = vmatprep.subr.mxu0 0.0
    %415 = vmatpush1.msra.mxu0 0.0
    %416 = vmatprep.subr.mxu0 0.0
    %417 = vmatpush1.msra.mxu0 0.0
    %418 = vmatprep.subr.mxu0 0.0
    %419 = vmatpush1.msra.mxu0 0.0
    %420 = vmatprep.mubr.f32.mxu0 0.0
    %421 = vmatmul.mubr.f32.gmra.mrb[0].mxu0 %v283
    %v422 = vpop.f32.mrb[0].mxu0
    %v423 = vadd.f32 0.0, %v422
    %v424 = vpop.f32.mrb[0].mxu0
    %425 = vdwg.mxu0
    %v426 = vadd.f32 %v149, %v423
    %v427 = vtanh.pop %v426
    %v428 = vld [vmem:[%s4 + $0x40] sm:$0xff]
    %v429 = vld [vmem:[%s4 + $0x48] sm:$0xff]
    %v430 = vld [vmem:[%s4 + $0x50] sm:$0xff]
    %v431 = vld [vmem:[%s4 + $0x58] sm:$0xff]
    %v432 = vld [vmem:[%s4 + $0x60] sm:$0xff]
    %v433 = vld [vmem:[%s4 + $0x68] sm:$0xff]
    %v434 = vld [vmem:[%s4 + $0x70] sm:$0xff]
    %v435 = vld [vmem:[%s4 + $0x78] sm:$0xff]
    %v437 = vsel %vm198, %v427, 0
    %439 = vmatprep.subr.mxu0 0.0
    %440 = vmatpush1.msra.mxu0 %v428
    %441 = vmatprep.subr.mxu0 0.0
    %442 = vmatpush1.msra.mxu0 %v429
    %443 = vmatprep.subr.mxu0 0.0
    %444 = vmatpush1.msra.mxu0 %v430
    %445 = vmatprep.subr.mxu0 0.0
    %446 = vmatpush1.msra.mxu0 %v431
    %447 = vmatprep.subr.mxu0 0.0
    %448 = vmatpush1.msra.mxu0 %v432
    %449 = vmatprep.subr.mxu0 0.0
    %450 = vmatpush1.msra.mxu0 %v433
    %451 = vmatprep.subr.mxu0 0.0
    %452 = vmatpush1.msra.mxu0 %v434
    %453 = vmatprep.subr.mxu0 0.0
    %454 = vmatpush1.msra.mxu0 %v435
    %455 = vmatprep.subr.mxu0 0.0
    %456 = vmatpush1.msra.mxu0 0.0
    %457 = vmatprep.subr.mxu0 0.0
    %458 = vmatpush1.msra.mxu0 0.0
    %459 = vmatprep.subr.mxu0 0.0
    %460 = vmatpush1.msra.mxu0 0.0
    %461 = vmatprep.subr.mxu0 0.0
    %462 = vmatpush1.msra.mxu0 0.0
    %463 = vmatprep.subr.mxu0 0.0
    %464 = vmatpush1.msra.mxu0 0.0
    %465 = vmatprep.subr.mxu0 0.0
    %466 = vmatpush1.msra.mxu0 0.0
    %467 = vmatprep.subr.mxu0 0.0
    %468 = vmatpush1.msra.mxu0 0.0
    %469 = vmatprep.subr.mxu0 0.0
    %470 = vmatpush1.msra.mxu0 0.0
    %471 = vmatprep.subr.mxu0 0.0
    %472 = vmatpush1.msra.mxu0 0.0
    %473 = vmatprep.subr.mxu0 0.0
    %474 = vmatpush1.msra.mxu0 0.0
    %475 = vmatprep.subr.mxu0 0.0
    %476 = vmatpush1.msra.mxu0 0.0
    %477 = vmatprep.subr.mxu0 0.0
    %478 = vmatpush1.msra.mxu0 0.0
    %479 = vmatprep.subr.mxu0 0.0
    %480 = vmatpush1.msra.mxu0 0.0
    %481 = vmatprep.subr.mxu0 0.0
    %482 = vmatpush1.msra.mxu0 0.0
    %483 = vmatprep.subr.mxu0 0.0
    %484 = vmatpush1.msra.mxu0 0.0
    %485 = vmatprep.subr.mxu0 0.0
    %486 = vmatpush1.msra.mxu0 0.0
    %487 = vmatprep.subr.mxu0 0.0
    %488 = vmatpush1.msra.mxu0 0.0
    %489 = vmatprep.subr.mxu0 0.0
    %490 = vmatpush1.msra.mxu0 0.0
    %491 = vmatprep.subr.mxu0 0.0
    %492 = vmatpush1.msra.mxu0 0.0
    %493 = vmatprep.subr.mxu0 0.0
    %494 = vmatpush1.msra.mxu0 0.0
    %495 = vmatprep.subr.mxu0 0.0
    %496 = vmatpush1.msra.mxu0 0.0
    %497 = vmatprep.subr.mxu0 0.0
    %498 = vmatpush1.msra.mxu0 0.0
    %499 = vmatprep.subr.mxu0 0.0
    %500 = vmatpush1.msra.mxu0 0.0
    %501 = vmatprep.subr.mxu0 0.0
    %502 = vmatpush1.msra.mxu0 0.0
    %503 = vmatprep.mubr.f32.mxu0 0.0
    %504 = vmatmul.mubr.f32.gmra.mrb[0].mxu0 %v437
    %v505 = vpop.f32.mrb[0].mxu0
    %v506 = vadd.f32 0.0, %v505
    %v507 = vpop.f32.mrb[0].mxu0
    %508 = vdwg.mxu0
    %v509 = vadd.f32 %v355, %v506
    %510 = vmatprep.subr.mxu0 0.0
    %511 = vmatpush1.msra.mxu0 %v182
    %512 = vmatprep.subr.mxu0 0.0
    %513 = vmatpush1.msra.mxu0 %v183
    %514 = vmatprep.subr.mxu0 0.0
    %515 = vmatpush1.msra.mxu0 %v184
    %516 = vmatprep.subr.mxu0 0.0
    %517 = vmatpush1.msra.mxu0 %v185
    %518 = vmatprep.subr.mxu0 0.0
    %519 = vmatpush1.msra.mxu0 %v186
    %520 = vmatprep.subr.mxu0 0.0
    %521 = vmatpush1.msra.mxu0 %v187
    %522 = vmatprep.subr.mxu0 0.0
    %523 = vmatpush1.msra.mxu0 %v188
    %524 = vmatprep.subr.mxu0 0.0
    %525 = vmatpush1.msra.mxu0 %v189
    %526 = vmatprep.subr.mxu0 0.0
    %527 = vmatpush1.msra.mxu0 0.0
    %528 = vmatprep.subr.mxu0 0.0
    %529 = vmatpush1.msra.mxu0 0.0
    %530 = vmatprep.subr.mxu0 0.0
    %531 = vmatpush1.msra.mxu0 0.0
    %532 = vmatprep.subr.mxu0 0.0
    %533 = vmatpush1.msra.mxu0 0.0
    %534 = vmatprep.subr.mxu0 0.0
    %535 = vmatpush1.msra.mxu0 0.0
    %536 = vmatprep.subr.mxu0 0.0
    %537 = vmatpush1.msra.mxu0 0.0
    %538 = vmatprep.subr.mxu0 0.0
    %539 = vmatpush1.msra.mxu0 0.0
    %540 = vmatprep.subr.mxu0 0.0
    %541 = vmatpush1.msra.mxu0 0.0
    %542 = vmatprep.subr.mxu0 0.0
    %543 = vmatpush1.msra.mxu0 0.0
    %544 = vmatprep.subr.mxu0 0.0
    %545 = vmatpush1.msra.mxu0 0.0
    %546 = vmatprep.subr.mxu0 0.0
    %547 = vmatpush1.msra.mxu0 0.0
    %548 = vmatprep.subr.mxu0 0.0
    %549 = vmatpush1.msra.mxu0 0.0
    %550 = vmatprep.subr.mxu0 0.0
    %551 = vmatpush1.msra.mxu0 0.0
    %552 = vmatprep.subr.mxu0 0.0
    %553 = vmatpush1.msra.mxu0 0.0
    %554 = vmatprep.subr.mxu0 0.0
    %555 = vmatpush1.msra.mxu0 0.0
    %556 = vmatprep.subr.mxu0 0.0
    %557 = vmatpush1.msra.mxu0 0.0
    %558 = vmatprep.subr.mxu0 0.0
    %559 = vmatpush1.msra.mxu0 0.0
    %560 = vmatprep.subr.mxu0 0.0
    %561 = vmatpush1.msra.mxu0 0.0
    %562 = vmatprep.subr.mxu0 0.0
    %563 = vmatpush1.msra.mxu0 0.0
    %564 = vmatprep.subr.mxu0 0.0
    %565 = vmatpush1.msra.mxu0 0.0
    %566 = vmatprep.subr.mxu0 0.0
    %567 = vmatpush1.msra.mxu0 0.0
    %568 = vmatprep.subr.mxu0 0.0
    %569 = vmatpush1.msra.mxu0 0.0
    %570 = vmatprep.subr.mxu0 0.0
    %571 = vmatpush1.msra.mxu0 0.0
    %572 = vmatprep.subr.mxu0 0.0
    %573 = vmatpush1.msra.mxu0 0.0
    %574 = vmatprep.mubr.f32.mxu0 0.0
    %575 = vmatmul.mubr.f32.gmra.mrb[0].mxu0 %v437
    %v576 = vpop.f32.mrb[0].mxu0
    %v577 = vadd.f32 0.0, %v576
    %v578 = vpop.f32.mrb[0].mxu0
    %579 = vdwg.mxu0
    %v580 = vadd.f32 %v154, %v577
    %v581 = vtanh.pop %v580
    %v582 = vld [vmem:[%s4 + $0x80] sm:$0xff]
    %v583 = vld [vmem:[%s4 + $0x88] sm:$0xff]
    %v584 = vld [vmem:[%s4 + $0x90] sm:$0xff]
    %v585 = vld [vmem:[%s4 + $0x98] sm:$0xff]
    %v586 = vld [vmem:[%s4 + $0xa0] sm:$0xff]
    %v587 = vld [vmem:[%s4 + $0xa8] sm:$0xff]
    %v588 = vld [vmem:[%s4 + $0xb0] sm:$0xff]
    %v589 = vld [vmem:[%s4 + $0xb8] sm:$0xff]
    %v591 = vsel %vm198, %v581, 0
    %593 = vmatprep.subr.mxu0 0.0
    %594 = vmatpush1.msra.mxu0 %v582
    %595 = vmatprep.subr.mxu0 0.0
    %596 = vmatpush1.msra.mxu0 %v583
    %597 = vmatprep.subr.mxu0 0.0
    %598 = vmatpush1.msra.mxu0 %v584
    %599 = vmatprep.subr.mxu0 0.0
    %600 = vmatpush1.msra.mxu0 %v585
    %601 = vmatprep.subr.mxu0 0.0
    %602 = vmatpush1.msra.mxu0 %v586
    %603 = vmatprep.subr.mxu0 0.0
    %604 = vmatpush1.msra.mxu0 %v587
    %605 = vmatprep.subr.mxu0 0.0
    %606 = vmatpush1.msra.mxu0 %v588
    %607 = vmatprep.subr.mxu0 0.0
    %608 = vmatpush1.msra.mxu0 %v589
    %609 = vmatprep.subr.mxu0 0.0
    %610 = vmatpush1.msra.mxu0 0.0
    %611 = vmatprep.subr.mxu0 0.0
    %612 = vmatpush1.msra.mxu0 0.0
    %613 = vmatprep.subr.mxu0 0.0
    %614 = vmatpush1.msra.mxu0 0.0
    %615 = vmatprep.subr.mxu0 0.0
    %616 = vmatpush1.msra.mxu0 0.0
    %617 = vmatprep.subr.mxu0 0.0
    %618 = vmatpush1.msra.mxu0 0.0
    %619 = vmatprep.subr.mxu0 0.0
    %620 = vmatpush1.msra.mxu0 0.0
    %621 = vmatprep.subr.mxu0 0.0
    %622 = vmatpush1.msra.mxu0 0.0
    %623 = vmatprep.subr.mxu0 0.0
    %624 = vmatpush1.msra.mxu0 0.0
    %625 = vmatprep.subr.mxu0 0.0
    %626 = vmatpush1.msra.mxu0 0.0
    %627 = vmatprep.subr.mxu0 0.0
    %628 = vmatpush1.msra.mxu0 0.0
    %629 = vmatprep.subr.mxu0 0.0
    %630 = vmatpush1.msra.mxu0 0.0
    %631 = vmatprep.subr.mxu0 0.0
    %632 = vmatpush1.msra.mxu0 0.0
    %633 = vmatprep.subr.mxu0 0.0
    %634 = vmatpush1.msra.mxu0 0.0
    %635 = vmatprep.subr.mxu0 0.0
    %636 = vmatpush1.msra.mxu0 0.0
    %637 = vmatprep.subr.mxu0 0.0
    %638 = vmatpush1.msra.mxu0 0.0
    %639 = vmatprep.subr.mxu0 0.0
    %640 = vmatpush1.msra.mxu0 0.0
    %641 = vmatprep.subr.mxu0 0.0
    %642 = vmatpush1.msra.mxu0 0.0
    %643 = vmatprep.subr.mxu0 0.0
    %644 = vmatpush1.msra.mxu0 0.0
    %645 = vmatprep.subr.mxu0 0.0
    %646 = vmatpush1.msra.mxu0 0.0
    %647 = vmatprep.subr.mxu0 0.0
    %648 = vmatpush1.msra.mxu0 0.0
    %649 = vmatprep.subr.mxu0 0.0
    %650 = vmatpush1.msra.mxu0 0.0
    %651 = vmatprep.subr.mxu0 0.0
    %652 = vmatpush1.msra.mxu0 0.0
    %653 = vmatprep.subr.mxu0 0.0
    %654 = vmatpush1.msra.mxu0 0.0
    %655 = vmatprep.subr.mxu0 0.0
    %656 = vmatpush1.msra.mxu0 0.0
    %657 = vmatprep.mubr.f32.mxu0 0.0
    %658 = vmatmul.mubr.f32.gmra.mrb[0].mxu0 %v591
    %v659 = vpop.f32.mrb[0].mxu0
    %v660 = vadd.f32 0.0, %v659
    %v661 = vpop.f32.mrb[0].mxu0
    %662 = vdwg.mxu0
    %v663 = vadd.f32 %v509, %v660
    %664 = vmatprep.subr.mxu0 0.0
    %665 = vmatpush1.msra.mxu0 %v182
    %666 = vmatprep.subr.mxu0 0.0
    %667 = vmatpush1.msra.mxu0 %v183
    %668 = vmatprep.subr.mxu0 0.0
    %669 = vmatpush1.msra.mxu0 %v184
    %670 = vmatprep.subr.mxu0 0.0
    %671 = vmatpush1.msra.mxu0 %v185
    %672 = vmatprep.subr.mxu0 0.0
    %673 = vmatpush1.msra.mxu0 %v186
    %674 = vmatprep.subr.mxu0 0.0
    %675 = vmatpush1.msra.mxu0 %v187
    %676 = vmatprep.subr.mxu0 0.0
    %677 = vmatpush1.msra.mxu0 %v188
    %678 = vmatprep.subr.mxu0 0.0
    %679 = vmatpush1.msra.mxu0 %v189
    %680 = vmatprep.subr.mxu0 0.0
    %681 = vmatpush1.msra.mxu0 0.0
    %682 = vmatprep.subr.mxu0 0.0
    %683 = vmatpush1.msra.mxu0 0.0
    %684 = vmatprep.subr.mxu0 0.0
    %685 = vmatpush1.msra.mxu0 0.0
    %686 = vmatprep.subr.mxu0 0.0
    %687 = vmatpush1.msra.mxu0 0.0
    %688 = vmatprep.subr.mxu0 0.0
    %689 = vmatpush1.msra.mxu0 0.0
    %690 = vmatprep.subr.mxu0 0.0
    %691 = vmatpush1.msra.mxu0 0.0
    %692 = vmatprep.subr.mxu0 0.0
    %693 = vmatpush1.msra.mxu0 0.0
    %694 = vmatprep.subr.mxu0 0.0
    %695 = vmatpush1.msra.mxu0 0.0
    %696 = vmatprep.subr.mxu0 0.0
    %697 = vmatpush1.msra.mxu0 0.0
    %698 = vmatprep.subr.mxu0 0.0
    %699 = vmatpush1.msra.mxu0 0.0
    %700 = vmatprep.subr.mxu0 0.0
    %701 = vmatpush1.msra.mxu0 0.0
    %702 = vmatprep.subr.mxu0 0.0
    %703 = vmatpush1.msra.mxu0 0.0
    %704 = vmatprep.subr.mxu0 0.0
    %705 = vmatpush1.msra.mxu0 0.0
    %706 = vmatprep.subr.mxu0 0.0
    %707 = vmatpush1.msra.mxu0 0.0
    %708 = vmatprep.subr.mxu0 0.0
    %709 = vmatpush1.msra.mxu0 0.0
    %710 = vmatprep.subr.mxu0 0.0
    %711 = vmatpush1.msra.mxu0 0.0
    %712 = vmatprep.subr.mxu0 0.0
    %713 = vmatpush1.msra.mxu0 0.0
    %714 = vmatprep.subr.mxu0 0.0
    %715 = vmatpush1.msra.mxu0 0.0
    %716 = vmatprep.subr.mxu0 0.0
    %717 = vmatpush1.msra.mxu0 0.0
    %718 = vmatprep.subr.mxu0 0.0
    %719 = vmatpush1.msra.mxu0 0.0
    %720 = vmatprep.subr.mxu0 0.0
    %721 = vmatpush1.msra.mxu0 0.0
    %722 = vmatprep.subr.mxu0 0.0
    %723 = vmatpush1.msra.mxu0 0.0
    %724 = vmatprep.subr.mxu0 0.0
    %725 = vmatpush1.msra.mxu0 0.0
    %726 = vmatprep.subr.mxu0 0.0
    %727 = vmatpush1.msra.mxu0 0.0
    %728 = vmatprep.mubr.f32.mxu0 0.0
    %729 = vmatmul.mubr.f32.gmra.mrb[0].mxu0 %v591
    %v730 = vpop.f32.mrb[0].mxu0
    %v731 = vadd.f32 0.0, %v730
    %v732 = vpop.f32.mrb[0].mxu0
    %733 = vdwg.mxu0
    %v734 = vadd.f32 %v159, %v731
    %v735 = vtanh.pop %v734
    %v736 = vld [vmem:[%s4 + $0xc0] sm:$0xff]
    %v737 = vld [vmem:[%s4 + $0xc8] sm:$0xff]
    %v738 = vld [vmem:[%s4 + $0xd0] sm:$0xff]
    %v739 = vld [vmem:[%s4 + $0xd8] sm:$0xff]
    %v740 = vld [vmem:[%s4 + $0xe0] sm:$0xff]
    %v741 = vld [vmem:[%s4 + $0xe8] sm:$0xff]
    %v742 = vld [vmem:[%s4 + $0xf0] sm:$0xff]
    %v743 = vld [vmem:[%s4 + $0xf8] sm:$0xff]
    %v745 = vsel %vm198, %v735, 0
    %747 = vmatprep.subr.mxu0 0.0
    %748 = vmatpush1.msra.mxu0 %v736
    %749 = vmatprep.subr.mxu0 0.0
    %750 = vmatpush1.msra.mxu0 %v737
    %751 = vmatprep.subr.mxu0 0.0
    %752 = vmatpush1.msra.mxu0 %v738
    %753 = vmatprep.subr.mxu0 0.0
    %754 = vmatpush1.msra.mxu0 %v739
    %755 = vmatprep.subr.mxu0 0.0
    %756 = vmatpush1.msra.mxu0 %v740
    %757 = vmatprep.subr.mxu0 0.0
    %758 = vmatpush1.msra.mxu0 %v741
    %759 = vmatprep.subr.mxu0 0.0
    %760 = vmatpush1.msra.mxu0 %v742
    %761 = vmatprep.subr.mxu0 0.0
    %762 = vmatpush1.msra.mxu0 %v743
    %763 = vmatprep.subr.mxu0 0.0
    %764 = vmatpush1.msra.mxu0 0.0
    %765 = vmatprep.subr.mxu0 0.0
    %766 = vmatpush1.msra.mxu0 0.0
    %767 = vmatprep.subr.mxu0 0.0
    %768 = vmatpush1.msra.mxu0 0.0
    %769 = vmatprep.subr.mxu0 0.0
    %770 = vmatpush1.msra.mxu0 0.0
    %771 = vmatprep.subr.mxu0 0.0
    %772 = vmatpush1.msra.mxu0 0.0
    %773 = vmatprep.subr.mxu0 0.0
    %774 = vmatpush1.msra.mxu0 0.0
    %775 = vmatprep.subr.mxu0 0.0
    %776 = vmatpush1.msra.mxu0 0.0
    %777 = vmatprep.subr.mxu0 0.0
    %778 = vmatpush1.msra.mxu0 0.0
    %779 = vmatprep.subr.mxu0 0.0
    %780 = vmatpush1.msra.mxu0 0.0
    %781 = vmatprep.subr.mxu0 0.0
    %782 = vmatpush1.msra.mxu0 0.0
    %783 = vmatprep.subr.mxu0 0.0
    %784 = vmatpush1.msra.mxu0 0.0
    %785 = vmatprep.subr.mxu0 0.0
    %786 = vmatpush1.msra.mxu0 0.0
    %787 = vmatprep.subr.mxu0 0.0
    %788 = vmatpush1.msra.mxu0 0.0
    %789 = vmatprep.subr.mxu0 0.0
    %790 = vmatpush1.msra.mxu0 0.0
    %791 = vmatprep.subr.mxu0 0.0
    %792 = vmatpush1.msra.mxu0 0.0
    %793 = vmatprep.subr.mxu0 0.0
    %794 = vmatpush1.msra.mxu0 0.0
    %795 = vmatprep.subr.mxu0 0.0
    %796 = vmatpush1.msra.mxu0 0.0
    %797 = vmatprep.subr.mxu0 0.0
    %798 = vmatpush1.msra.mxu0 0.0
    %799 = vmatprep.subr.mxu0 0.0
    %800 = vmatpush1.msra.mxu0 0.0
    %801 = vmatprep.subr.mxu0 0.0
    %802 = vmatpush1.msra.mxu0 0.0
    %803 = vmatprep.subr.mxu0 0.0
    %804 = vmatpush1.msra.mxu0 0.0
    %805 = vmatprep.subr.mxu0 0.0
    %806 = vmatpush1.msra.mxu0 0.0
    %807 = vmatprep.subr.mxu0 0.0
    %808 = vmatpush1.msra.mxu0 0.0
    %809 = vmatprep.subr.mxu0 0.0
    %810 = vmatpush1.msra.mxu0 0.0
    %811 = vmatprep.mubr.f32.mxu0 0.0
    %812 = vmatmul.mubr.f32.gmra.mrb[0].mxu0 %v745
    %v813 = vpop.f32.mrb[0].mxu0
    %v814 = vadd.f32 0.0, %v813
    %v815 = vpop.f32.mrb[0].mxu0
    %816 = vdwg.mxu0
    %v817 = vadd.f32 %v663, %v814
    %818 = vmatprep.subr.mxu0 0.0
    %819 = vmatpush1.msra.mxu0 %v182
    %820 = vmatprep.subr.mxu0 0.0
    %821 = vmatpush1.msra.mxu0 %v183
    %822 = vmatprep.subr.mxu0 0.0
    %823 = vmatpush1.msra.mxu0 %v184
    %824 = vmatprep.subr.mxu0 0.0
    %825 = vmatpush1.msra.mxu0 %v185
    %826 = vmatprep.subr.mxu0 0.0
    %827 = vmatpush1.msra.mxu0 %v186
    %828 = vmatprep.subr.mxu0 0.0
    %829 = vmatpush1.msra.mxu0 %v187
    %830 = vmatprep.subr.mxu0 0.0
    %831 = vmatpush1.msra.mxu0 %v188
    %832 = vmatprep.subr.mxu0 0.0
    %833 = vmatpush1.msra.mxu0 %v189
    %834 = vmatprep.subr.mxu0 0.0
    %835 = vmatpush1.msra.mxu0 0.0
    %836 = vmatprep.subr.mxu0 0.0
    %837 = vmatpush1.msra.mxu0 0.0
    %838 = vmatprep.subr.mxu0 0.0
    %839 = vmatpush1.msra.mxu0 0.0
    %840 = vmatprep.subr.mxu0 0.0
    %841 = vmatpush1.msra.mxu0 0.0
    %842 = vmatprep.subr.mxu0 0.0
    %843 = vmatpush1.msra.mxu0 0.0
    %844 = vmatprep.subr.mxu0 0.0
    %845 = vmatpush1.msra.mxu0 0.0
    %846 = vmatprep.subr.mxu0 0.0
    %847 = vmatpush1.msra.mxu0 0.0
    %848 = vmatprep.subr.mxu0 0.0
    %849 = vmatpush1.msra.mxu0 0.0
    %850 = vmatprep.subr.mxu0 0.0
    %851 = vmatpush1.msra.mxu0 0.0
    %852 = vmatprep.subr.mxu0 0.0
    %853 = vmatpush1.msra.mxu0 0.0
    %854 = vmatprep.subr.mxu0 0.0
    %855 = vmatpush1.msra.mxu0 0.0
    %856 = vmatprep.subr.mxu0 0.0
    %857 = vmatpush1.msra.mxu0 0.0
    %858 = vmatprep.subr.mxu0 0.0
    %859 = vmatpush1.msra.mxu0 0.0
    %860 = vmatprep.subr.mxu0 0.0
    %861 = vmatpush1.msra.mxu0 0.0
    %862 = vmatprep.subr.mxu0 0.0
    %863 = vmatpush1.msra.mxu0 0.0
    %864 = vmatprep.subr.mxu0 0.0
    %865 = vmatpush1.msra.mxu0 0.0
    %866 = vmatprep.subr.mxu0 0.0
    %867 = vmatpush1.msra.mxu0 0.0
    %868 = vmatprep.subr.mxu0 0.0
    %869 = vmatpush1.msra.mxu0 0.0
    %870 = vmatprep.subr.mxu0 0.0
    %871 = vmatpush1.msra.mxu0 0.0
    %872 = vmatprep.subr.mxu0 0.0
    %873 = vmatpush1.msra.mxu0 0.0
    %874 = vmatprep.subr.mxu0 0.0
    %875 = vmatpush1.msra.mxu0 0.0
    %876 = vmatprep.subr.mxu0 0.0
    %877 = vmatpush1.msra.mxu0 0.0
    %878 = vmatprep.subr.mxu0 0.0
    %879 = vmatpush1.msra.mxu0 0.0
    %880 = vmatprep.subr.mxu0 0.0
    %881 = vmatpush1.msra.mxu0 0.0
    %882 = vmatprep.mubr.f32.mxu0 0.0
    %883 = vmatmul.mubr.f32.gmra.mrb[0].mxu0 %v745
    %v884 = vpop.f32.mrb[0].mxu0
    %v885 = vadd.f32 0.0, %v884
    %v886 = vpop.f32.mrb[0].mxu0
    %887 = vdwg.mxu0
    %v888 = vadd.f32 %v164, %v885
    %v889 = vtanh.pop %v888
    %v890 = vld [vmem:[%s4 + $0x100] sm:$0xff]
    %v891 = vld [vmem:[%s4 + $0x108] sm:$0xff]
    %v892 = vld [vmem:[%s4 + $0x110] sm:$0xff]
    %v893 = vld [vmem:[%s4 + $0x118] sm:$0xff]
    %v894 = vld [vmem:[%s4 + $0x120] sm:$0xff]
    %v895 = vld [vmem:[%s4 + $0x128] sm:$0xff]
    %v896 = vld [vmem:[%s4 + $0x130] sm:$0xff]
    %v897 = vld [vmem:[%s4 + $0x138] sm:$0xff]
    %v899 = vsel %vm198, %v889, 0
    %901 = vmatprep.subr.mxu0 0.0
    %902 = vmatpush1.msra.mxu0 %v890
    %903 = vmatprep.subr.mxu0 0.0
    %904 = vmatpush1.msra.mxu0 %v891
    %905 = vmatprep.subr.mxu0 0.0
    %906 = vmatpush1.msra.mxu0 %v892
    %907 = vmatprep.subr.mxu0 0.0
    %908 = vmatpush1.msra.mxu0 %v893
    %909 = vmatprep.subr.mxu0 0.0
    %910 = vmatpush1.msra.mxu0 %v894
    %911 = vmatprep.subr.mxu0 0.0
    %912 = vmatpush1.msra.mxu0 %v895
    %913 = vmatprep.subr.mxu0 0.0
    %914 = vmatpush1.msra.mxu0 %v896
    %915 = vmatprep.subr.mxu0 0.0
    %916 = vmatpush1.msra.mxu0 %v897
    %917 = vmatprep.subr.mxu0 0.0
    %918 = vmatpush1.msra.mxu0 0.0
    %919 = vmatprep.subr.mxu0 0.0
    %920 = vmatpush1.msra.mxu0 0.0
    %921 = vmatprep.subr.mxu0 0.0
    %922 = vmatpush1.msra.mxu0 0.0
    %923 = vmatprep.subr.mxu0 0.0
    %924 = vmatpush1.msra.mxu0 0.0
    %925 = vmatprep.subr.mxu0 0.0
    %926 = vmatpush1.msra.mxu0 0.0
    %927 = vmatprep.subr.mxu0 0.0
    %928 = vmatpush1.msra.mxu0 0.0
    %929 = vmatprep.subr.mxu0 0.0
    %930 = vmatpush1.msra.mxu0 0.0
    %931 = vmatprep.subr.mxu0 0.0
    %932 = vmatpush1.msra.mxu0 0.0
    %933 = vmatprep.subr.mxu0 0.0
    %934 = vmatpush1.msra.mxu0 0.0
    %935 = vmatprep.subr.mxu0 0.0
    %936 = vmatpush1.msra.mxu0 0.0
    %937 = vmatprep.subr.mxu0 0.0
    %938 = vmatpush1.msra.mxu0 0.0
    %939 = vmatprep.subr.mxu0 0.0
    %940 = vmatpush1.msra.mxu0 0.0
    %941 = vmatprep.subr.mxu0 0.0
    %942 = vmatpush1.msra.mxu0 0.0
    %943 = vmatprep.subr.mxu0 0.0
    %944 = vmatpush1.msra.mxu0 0.0
    %945 = vmatprep.subr.mxu0 0.0
    %946 = vmatpush1.msra.mxu0 0.0
    %947 = vmatprep.subr.mxu0 0.0
    %948 = vmatpush1.msra.mxu0 0.0
    %949 = vmatprep.subr.mxu0 0.0
    %950 = vmatpush1.msra.mxu0 0.0
    %951 = vmatprep.subr.mxu0 0.0
    %952 = vmatpush1.msra.mxu0 0.0
    %953 = vmatprep.subr.mxu0 0.0
    %954 = vmatpush1.msra.mxu0 0.0
    %955 = vmatprep.subr.mxu0 0.0
    %956 = vmatpush1.msra.mxu0 0.0
    %957 = vmatprep.subr.mxu0 0.0
    %958 = vmatpush1.msra.mxu0 0.0
    %959 = vmatprep.subr.mxu0 0.0
    %960 = vmatpush1.msra.mxu0 0.0
    %961 = vmatprep.subr.mxu0 0.0
    %962 = vmatpush1.msra.mxu0 0.0
    %963 = vmatprep.subr.mxu0 0.0
    %964 = vmatpush1.msra.mxu0 0.0
    %965 = vmatprep.mubr.f32.mxu0 0.0
    %966 = vmatmul.mubr.f32.gmra.mrb[0].mxu0 %v899
    %v967 = vpop.f32.mrb[0].mxu0
    %v968 = vadd.f32 0.0, %v967
    %v969 = vpop.f32.mrb[0].mxu0
    %970 = vdwg.mxu0
    %v971 = vadd.f32 %v817, %v968
    %972 = vmatprep.subr.mxu0 0.0
    %973 = vmatpush1.msra.mxu0 %v182
    %974 = vmatprep.subr.mxu0 0.0
    %975 = vmatpush1.msra.mxu0 %v183
    %976 = vmatprep.subr.mxu0 0.0
    %977 = vmatpush1.msra.mxu0 %v184
    %978 = vmatprep.subr.mxu0 0.0
    %979 = vmatpush1.msra.mxu0 %v185
    %980 = vmatprep.subr.mxu0 0.0
    %981 = vmatpush1.msra.mxu0 %v186
    %982 = vmatprep.subr.mxu0 0.0
    %983 = vmatpush1.msra.mxu0 %v187
    %984 = vmatprep.subr.mxu0 0.0
    %985 = vmatpush1.msra.mxu0 %v188
    %986 = vmatprep.subr.mxu0 0.0
    %987 = vmatpush1.msra.mxu0 %v189
    %988 = vmatprep.subr.mxu0 0.0
    %989 = vmatpush1.msra.mxu0 0.0
    %990 = vmatprep.subr.mxu0 0.0
    %991 = vmatpush1.msra.mxu0 0.0
    %992 = vmatprep.subr.mxu0 0.0
    %993 = vmatpush1.msra.mxu0 0.0
    %994 = vmatprep.subr.mxu0 0.0
    %995 = vmatpush1.msra.mxu0 0.0
    %996 = vmatprep.subr.mxu0 0.0
    %997 = vmatpush1.msra.mxu0 0.0
    %998 = vmatprep.subr.mxu0 0.0
    %999 = vmatpush1.msra.mxu0 0.0
    %1000 = vmatprep.subr.mxu0 0.0
    %1001 = vmatpush1.msra.mxu0 0.0
    %1002 = vmatprep.subr.mxu0 0.0
    %1003 = vmatpush1.msra.mxu0 0.0
    %1004 = vmatprep.subr.mxu0 0.0
    %1005 = vmatpush1.msra.mxu0 0.0
    %1006 = vmatprep.subr.mxu0 0.0
    %1007 = vmatpush1.msra.mxu0 0.0
    %1008 = vmatprep.subr.mxu0 0.0
    %1009 = vmatpush1.msra.mxu0 0.0
    %1010 = vmatprep.subr.mxu0 0.0
    %1011 = vmatpush1.msra.mxu0 0.0
    %1012 = vmatprep.subr.mxu0 0.0
    %1013 = vmatpush1.msra.mxu0 0.0
    %1014 = vmatprep.subr.mxu0 0.0
    %1015 = vmatpush1.msra.mxu0 0.0
    %1016 = vmatprep.subr.mxu0 0.0
    %1017 = vmatpush1.msra.mxu0 0.0
    %1018 = vmatprep.subr.mxu0 0.0
    %1019 = vmatpush1.msra.mxu0 0.0
    %1020 = vmatprep.subr.mxu0 0.0
    %1021 = vmatpush1.msra.mxu0 0.0
    %1022 = vmatprep.subr.mxu0 0.0
    %1023 = vmatpush1.msra.mxu0 0.0
    %1024 = vmatprep.subr.mxu0 0.0
    %1025 = vmatpush1.msra.mxu0 0.0
    %1026 = vmatprep.subr.mxu0 0.0
    %1027 = vmatpush1.msra.mxu0 0.0
    %1028 = vmatprep.subr.mxu0 0.0
    %1029 = vmatpush1.msra.mxu0 0.0
    %1030 = vmatprep.subr.mxu0 0.0
    %1031 = vmatpush1.msra.mxu0 0.0
    %1032 = vmatprep.subr.mxu0 0.0
    %1033 = vmatpush1.msra.mxu0 0.0
    %1034 = vmatprep.subr.mxu0 0.0
    %1035 = vmatpush1.msra.mxu0 0.0
    %1036 = vmatprep.mubr.f32.mxu0 0.0
    %1037 = vmatmul.mubr.f32.gmra.mrb[0].mxu0 %v899
    %v1038 = vpop.f32.mrb[0].mxu0
    %v1039 = vadd.f32 0.0, %v1038
    %v1040 = vpop.f32.mrb[0].mxu0
    %1041 = vdwg.mxu0
    %v1042 = vadd.f32 %v169, %v1039
    %v1043 = vtanh.pop %v1042
    %v1044 = vld [vmem:[%s4 + $0x140] sm:$0xff]
    %v1045 = vld [vmem:[%s4 + $0x148] sm:$0xff]
    %v1046 = vld [vmem:[%s4 + $0x150] sm:$0xff]
    %v1047 = vld [vmem:[%s4 + $0x158] sm:$0xff]
    %v1048 = vld [vmem:[%s4 + $0x160] sm:$0xff]
    %v1049 = vld [vmem:[%s4 + $0x168] sm:$0xff]
    %v1050 = vld [vmem:[%s4 + $0x170] sm:$0xff]
    %v1051 = vld [vmem:[%s4 + $0x178] sm:$0xff]
    %v1053 = vsel %vm198, %v1043, 0
    %1055 = vmatprep.subr.mxu0 0.0
    %1056 = vmatpush1.msra.mxu0 %v1044
    %1057 = vmatprep.subr.mxu0 0.0
    %1058 = vmatpush1.msra.mxu0 %v1045
    %1059 = vmatprep.subr.mxu0 0.0
    %1060 = vmatpush1.msra.mxu0 %v1046
    %1061 = vmatprep.subr.mxu0 0.0
    %1062 = vmatpush1.msra.mxu0 %v1047
    %1063 = vmatprep.subr.mxu0 0.0
    %1064 = vmatpush1.msra.mxu0 %v1048
    %1065 = vmatprep.subr.mxu0 0.0
    %1066 = vmatpush1.msra.mxu0 %v1049
    %1067 = vmatprep.subr.mxu0 0.0
    %1068 = vmatpush1.msra.mxu0 %v1050
    %1069 = vmatprep.subr.mxu0 0.0
    %1070 = vmatpush1.msra.mxu0 %v1051
    %1071 = vmatprep.subr.mxu0 0.0
    %1072 = vmatpush1.msra.mxu0 0.0
    %1073 = vmatprep.subr.mxu0 0.0
    %1074 = vmatpush1.msra.mxu0 0.0
    %1075 = vmatprep.subr.mxu0 0.0
    %1076 = vmatpush1.msra.mxu0 0.0
    %1077 = vmatprep.subr.mxu0 0.0
    %1078 = vmatpush1.msra.mxu0 0.0
    %1079 = vmatprep.subr.mxu0 0.0
    %1080 = vmatpush1.msra.mxu0 0.0
    %1081 = vmatprep.subr.mxu0 0.0
    %1082 = vmatpush1.msra.mxu0 0.0
    %1083 = vmatprep.subr.mxu0 0.0
    %1084 = vmatpush1.msra.mxu0 0.0
    %1085 = vmatprep.subr.mxu0 0.0
    %1086 = vmatpush1.msra.mxu0 0.0
    %1087 = vmatprep.subr.mxu0 0.0
    %1088 = vmatpush1.msra.mxu0 0.0
    %1089 = vmatprep.subr.mxu0 0.0
    %1090 = vmatpush1.msra.mxu0 0.0
    %1091 = vmatprep.subr.mxu0 0.0
    %1092 = vmatpush1.msra.mxu0 0.0
    %1093 = vmatprep.subr.mxu0 0.0
    %1094 = vmatpush1.msra.mxu0 0.0
    %1095 = vmatprep.subr.mxu0 0.0
    %1096 = vmatpush1.msra.mxu0 0.0
    %1097 = vmatprep.subr.mxu0 0.0
    %1098 = vmatpush1.msra.mxu0 0.0
    %1099 = vmatprep.subr.mxu0 0.0
    %1100 = vmatpush1.msra.mxu0 0.0
    %1101 = vmatprep.subr.mxu0 0.0
    %1102 = vmatpush1.msra.mxu0 0.0
    %1103 = vmatprep.subr.mxu0 0.0
    %1104 = vmatpush1.msra.mxu0 0.0
    %1105 = vmatprep.subr.mxu0 0.0
    %1106 = vmatpush1.msra.mxu0 0.0
    %1107 = vmatprep.subr.mxu0 0.0
    %1108 = vmatpush1.msra.mxu0 0.0
    %1109 = vmatprep.subr.mxu0 0.0
    %1110 = vmatpush1.msra.mxu0 0.0
    %1111 = vmatprep.subr.mxu0 0.0
    %1112 = vmatpush1.msra.mxu0 0.0
    %1113 = vmatprep.subr.mxu0 0.0
    %1114 = vmatpush1.msra.mxu0 0.0
    %1115 = vmatprep.subr.mxu0 0.0
    %1116 = vmatpush1.msra.mxu0 0.0
    %1117 = vmatprep.subr.mxu0 0.0
    %1118 = vmatpush1.msra.mxu0 0.0
    %1119 = vmatprep.mubr.f32.mxu0 0.0
    %1120 = vmatmul.mubr.f32.gmra.mrb[0].mxu0 %v1053
    %v1121 = vpop.f32.mrb[0].mxu0
    %v1122 = vadd.f32 0.0, %v1121
    %v1123 = vpop.f32.mrb[0].mxu0
    %1124 = vdwg.mxu0
    %v1125 = vadd.f32 %v971, %v1122
    %1126 = vmatprep.subr.mxu0 0.0
    %1127 = vmatpush1.msra.mxu0 %v182
    %1128 = vmatprep.subr.mxu0 0.0
    %1129 = vmatpush1.msra.mxu0 %v183
    %1130 = vmatprep.subr.mxu0 0.0
    %1131 = vmatpush1.msra.mxu0 %v184
    %1132 = vmatprep.subr.mxu0 0.0
    %1133 = vmatpush1.msra.mxu0 %v185
    %1134 = vmatprep.subr.mxu0 0.0
    %1135 = vmatpush1.msra.mxu0 %v186
    %1136 = vmatprep.subr.mxu0 0.0
    %1137 = vmatpush1.msra.mxu0 %v187
    %1138 = vmatprep.subr.mxu0 0.0
    %1139 = vmatpush1.msra.mxu0 %v188
    %1140 = vmatprep.subr.mxu0 0.0
    %1141 = vmatpush1.msra.mxu0 %v189
    %1142 = vmatprep.subr.mxu0 0.0
    %1143 = vmatpush1.msra.mxu0 0.0
    %1144 = vmatprep.subr.mxu0 0.0
    %1145 = vmatpush1.msra.mxu0 0.0
    %1146 = vmatprep.subr.mxu0 0.0
    %1147 = vmatpush1.msra.mxu0 0.0
    %1148 = vmatprep.subr.mxu0 0.0
    %1149 = vmatpush1.msra.mxu0 0.0
    %1150 = vmatprep.subr.mxu0 0.0
    %1151 = vmatpush1.msra.mxu0 0.0
    %1152 = vmatprep.subr.mxu0 0.0
    %1153 = vmatpush1.msra.mxu0 0.0
    %1154 = vmatprep.subr.mxu0 0.0
    %1155 = vmatpush1.msra.mxu0 0.0
    %1156 = vmatprep.subr.mxu0 0.0
    %1157 = vmatpush1.msra.mxu0 0.0
    %1158 = vmatprep.subr.mxu0 0.0
    %1159 = vmatpush1.msra.mxu0 0.0
    %1160 = vmatprep.subr.mxu0 0.0
    %1161 = vmatpush1.msra.mxu0 0.0
    %1162 = vmatprep.subr.mxu0 0.0
    %1163 = vmatpush1.msra.mxu0 0.0
    %1164 = vmatprep.subr.mxu0 0.0
    %1165 = vmatpush1.msra.mxu0 0.0
    %1166 = vmatprep.subr.mxu0 0.0
    %1167 = vmatpush1.msra.mxu0 0.0
    %1168 = vmatprep.subr.mxu0 0.0
    %1169 = vmatpush1.msra.mxu0 0.0
    %1170 = vmatprep.subr.mxu0 0.0
    %1171 = vmatpush1.msra.mxu0 0.0
    %1172 = vmatprep.subr.mxu0 0.0
    %1173 = vmatpush1.msra.mxu0 0.0
    %1174 = vmatprep.subr.mxu0 0.0
    %1175 = vmatpush1.msra.mxu0 0.0
    %1176 = vmatprep.subr.mxu0 0.0
    %1177 = vmatpush1.msra.mxu0 0.0
    %1178 = vmatprep.subr.mxu0 0.0
    %1179 = vmatpush1.msra.mxu0 0.0
    %1180 = vmatprep.subr.mxu0 0.0
    %1181 = vmatpush1.msra.mxu0 0.0
    %1182 = vmatprep.subr.mxu0 0.0
    %1183 = vmatpush1.msra.mxu0 0.0
    %1184 = vmatprep.subr.mxu0 0.0
    %1185 = vmatpush1.msra.mxu0 0.0
    %1186 = vmatprep.subr.mxu0 0.0
    %1187 = vmatpush1.msra.mxu0 0.0
    %1188 = vmatprep.subr.mxu0 0.0
    %1189 = vmatpush1.msra.mxu0 0.0
    %1190 = vmatprep.mubr.f32.mxu0 0.0
    %1191 = vmatmul.mubr.f32.gmra.mrb[0].mxu0 %v1053
    %v1192 = vpop.f32.mrb[0].mxu0
    %v1193 = vadd.f32 0.0, %v1192
    %v1194 = vpop.f32.mrb[0].mxu0
    %1195 = vdwg.mxu0
    %v1196 = vadd.f32 %v174, %v1193
    %v1197 = vtanh.pop %v1196
    %v1198 = vld [vmem:[%s4 + $0x180] sm:$0xff]
    %v1199 = vld [vmem:[%s4 + $0x188] sm:$0xff]
    %v1200 = vld [vmem:[%s4 + $0x190] sm:$0xff]
    %v1201 = vld [vmem:[%s4 + $0x198] sm:$0xff]
    %v1202 = vld [vmem:[%s4 + $0x1a0] sm:$0xff]
    %v1203 = vld [vmem:[%s4 + $0x1a8] sm:$0xff]
    %v1204 = vld [vmem:[%s4 + $0x1b0] sm:$0xff]
    %v1205 = vld [vmem:[%s4 + $0x1b8] sm:$0xff]
    %v1207 = vsel %vm198, %v1197, 0
    %1209 = vmatprep.subr.mxu0 0.0
    %1210 = vmatpush1.msra.mxu0 %v1198
    %1211 = vmatprep.subr.mxu0 0.0
    %1212 = vmatpush1.msra.mxu0 %v1199
    %1213 = vmatprep.subr.mxu0 0.0
    %1214 = vmatpush1.msra.mxu0 %v1200
    %1215 = vmatprep.subr.mxu0 0.0
    %1216 = vmatpush1.msra.mxu0 %v1201
    %1217 = vmatprep.subr.mxu0 0.0
    %1218 = vmatpush1.msra.mxu0 %v1202
    %1219 = vmatprep.subr.mxu0 0.0
    %1220 = vmatpush1.msra.mxu0 %v1203
    %1221 = vmatprep.subr.mxu0 0.0
    %1222 = vmatpush1.msra.mxu0 %v1204
    %1223 = vmatprep.subr.mxu0 0.0
    %1224 = vmatpush1.msra.mxu0 %v1205
    %1225 = vmatprep.subr.mxu0 0.0
    %1226 = vmatpush1.msra.mxu0 0.0
    %1227 = vmatprep.subr.mxu0 0.0
    %1228 = vmatpush1.msra.mxu0 0.0
    %1229 = vmatprep.subr.mxu0 0.0
    %1230 = vmatpush1.msra.mxu0 0.0
    %1231 = vmatprep.subr.mxu0 0.0
    %1232 = vmatpush1.msra.mxu0 0.0
    %1233 = vmatprep.subr.mxu0 0.0
    %1234 = vmatpush1.msra.mxu0 0.0
    %1235 = vmatprep.subr.mxu0 0.0
    %1236 = vmatpush1.msra.mxu0 0.0
    %1237 = vmatprep.subr.mxu0 0.0
    %1238 = vmatpush1.msra.mxu0 0.0
    %1239 = vmatprep.subr.mxu0 0.0
    %1240 = vmatpush1.msra.mxu0 0.0
    %1241 = vmatprep.subr.mxu0 0.0
    %1242 = vmatpush1.msra.mxu0 0.0
    %1243 = vmatprep.subr.mxu0 0.0
    %1244 = vmatpush1.msra.mxu0 0.0
    %1245 = vmatprep.subr.mxu0 0.0
    %1246 = vmatpush1.msra.mxu0 0.0
    %1247 = vmatprep.subr.mxu0 0.0
    %1248 = vmatpush1.msra.mxu0 0.0
    %1249 = vmatprep.subr.mxu0 0.0
    %1250 = vmatpush1.msra.mxu0 0.0
    %1251 = vmatprep.subr.mxu0 0.0
    %1252 = vmatpush1.msra.mxu0 0.0
    %1253 = vmatprep.subr.mxu0 0.0
    %1254 = vmatpush1.msra.mxu0 0.0
    %1255 = vmatprep.subr.mxu0 0.0
    %1256 = vmatpush1.msra.mxu0 0.0
    %1257 = vmatprep.subr.mxu0 0.0
    %1258 = vmatpush1.msra.mxu0 0.0
    %1259 = vmatprep.subr.mxu0 0.0
    %1260 = vmatpush1.msra.mxu0 0.0
    %1261 = vmatprep.subr.mxu0 0.0
    %1262 = vmatpush1.msra.mxu0 0.0
    %1263 = vmatprep.subr.mxu0 0.0
    %1264 = vmatpush1.msra.mxu0 0.0
    %1265 = vmatprep.subr.mxu0 0.0
    %1266 = vmatpush1.msra.mxu0 0.0
    %1267 = vmatprep.subr.mxu0 0.0
    %1268 = vmatpush1.msra.mxu0 0.0
    %1269 = vmatprep.subr.mxu0 0.0
    %1270 = vmatpush1.msra.mxu0 0.0
    %1271 = vmatprep.subr.mxu0 0.0
    %1272 = vmatpush1.msra.mxu0 0.0
    %1273 = vmatprep.mubr.f32.mxu0 0.0
    %1274 = vmatmul.mubr.f32.gmra.mrb[0].mxu0 %v1207
    %v1275 = vpop.f32.mrb[0].mxu0
    %v1276 = vadd.f32 0.0, %v1275
    %v1277 = vpop.f32.mrb[0].mxu0
    %1278 = vdwg.mxu0
    %v1279 = vadd.f32 %v1125, %v1276
    %1280 = vmatprep.subr.mxu0 0.0
    %1281 = vmatpush1.msra.mxu0 %v182
    %1282 = vmatprep.subr.mxu0 0.0
    %1283 = vmatpush1.msra.mxu0 %v183
    %1284 = vmatprep.subr.mxu0 0.0
    %1285 = vmatpush1.msra.mxu0 %v184
    %1286 = vmatprep.subr.mxu0 0.0
    %1287 = vmatpush1.msra.mxu0 %v185
    %1288 = vmatprep.subr.mxu0 0.0
    %1289 = vmatpush1.msra.mxu0 %v186
    %1290 = vmatprep.subr.mxu0 0.0
    %1291 = vmatpush1.msra.mxu0 %v187
    %1292 = vmatprep.subr.mxu0 0.0
    %1293 = vmatpush1.msra.mxu0 %v188
    %1294 = vmatprep.subr.mxu0 0.0
    %1295 = vmatpush1.msra.mxu0 %v189
    %1296 = vmatprep.subr.mxu0 0.0
    %1297 = vmatpush1.msra.mxu0 0.0
    %1298 = vmatprep.subr.mxu0 0.0
    %1299 = vmatpush1.msra.mxu0 0.0
    %1300 = vmatprep.subr.mxu0 0.0
    %1301 = vmatpush1.msra.mxu0 0.0
    %1302 = vmatprep.subr.mxu0 0.0
    %1303 = vmatpush1.msra.mxu0 0.0
    %1304 = vmatprep.subr.mxu0 0.0
    %1305 = vmatpush1.msra.mxu0 0.0
    %1306 = vmatprep.subr.mxu0 0.0
    %1307 = vmatpush1.msra.mxu0 0.0
    %1308 = vmatprep.subr.mxu0 0.0
    %1309 = vmatpush1.msra.mxu0 0.0
    %1310 = vmatprep.subr.mxu0 0.0
    %1311 = vmatpush1.msra.mxu0 0.0
    %1312 = vmatprep.subr.mxu0 0.0
    %1313 = vmatpush1.msra.mxu0 0.0
    %1314 = vmatprep.subr.mxu0 0.0
    %1315 = vmatpush1.msra.mxu0 0.0
    %1316 = vmatprep.subr.mxu0 0.0
    %1317 = vmatpush1.msra.mxu0 0.0
    %1318 = vmatprep.subr.mxu0 0.0
    %1319 = vmatpush1.msra.mxu0 0.0
    %1320 = vmatprep.subr.mxu0 0.0
    %1321 = vmatpush1.msra.mxu0 0.0
    %1322 = vmatprep.subr.mxu0 0.0
    %1323 = vmatpush1.msra.mxu0 0.0
    %1324 = vmatprep.subr.mxu0 0.0
    %1325 = vmatpush1.msra.mxu0 0.0
    %1326 = vmatprep.subr.mxu0 0.0
    %1327 = vmatpush1.msra.mxu0 0.0
    %1328 = vmatprep.subr.mxu0 0.0
    %1329 = vmatpush1.msra.mxu0 0.0
    %1330 = vmatprep.subr.mxu0 0.0
    %1331 = vmatpush1.msra.mxu0 0.0
    %1332 = vmatprep.subr.mxu0 0.0
    %1333 = vmatpush1.msra.mxu0 0.0
    %1334 = vmatprep.subr.mxu0 0.0
    %1335 = vmatpush1.msra.mxu0 0.0
    %1336 = vmatprep.subr.mxu0 0.0
    %1337 = vmatpush1.msra.mxu0 0.0
    %1338 = vmatprep.subr.mxu0 0.0
    %1339 = vmatpush1.msra.mxu0 0.0
    %1340 = vmatprep.subr.mxu0 0.0
    %1341 = vmatpush1.msra.mxu0 0.0
    %1342 = vmatprep.subr.mxu0 0.0
    %1343 = vmatpush1.msra.mxu0 0.0
    %1344 = vmatprep.mubr.f32.mxu0 0.0
    %1345 = vmatmul.mubr.f32.gmra.mrb[0].mxu0 %v1207
    %v1346 = vpop.f32.mrb[0].mxu0
    %v1347 = vadd.f32 0.0, %v1346
    %v1348 = vpop.f32.mrb[0].mxu0
    %1349 = vdwg.mxu0
    %v1350 = vadd.f32 %v179, %v1347
    %v1351 = vtanh.pop %v1350
    %v1352 = vld [vmem:[%s4 + $0x1c0] sm:$0xff]
    %v1353 = vld [vmem:[%s4 + $0x1c8] sm:$0xff]
    %v1354 = vld [vmem:[%s4 + $0x1d0] sm:$0xff]
    %v1355 = vld [vmem:[%s4 + $0x1d8] sm:$0xff]
    %v1356 = vld [vmem:[%s4 + $0x1e0] sm:$0xff]
    %v1357 = vld [vmem:[%s4 + $0x1e8] sm:$0xff]
    %v1358 = vld [vmem:[%s4 + $0x1f0] sm:$0xff]
    %v1359 = vld [vmem:[%s4 + $0x1f8] sm:$0xff]
    %v1361 = vsel %vm198, %v1351, 0
    %1363 = vmatprep.subr.mxu0 0.0
    %1364 = vmatpush1.msra.mxu0 %v1352
    %1365 = vmatprep.subr.mxu0 0.0
    %1366 = vmatpush1.msra.mxu0 %v1353
    %1367 = vmatprep.subr.mxu0 0.0
    %1368 = vmatpush1.msra.mxu0 %v1354
    %1369 = vmatprep.subr.mxu0 0.0
    %1370 = vmatpush1.msra.mxu0 %v1355
    %1371 = vmatprep.subr.mxu0 0.0
    %1372 = vmatpush1.msra.mxu0 %v1356
    %1373 = vmatprep.subr.mxu0 0.0
    %1374 = vmatpush1.msra.mxu0 %v1357
    %1375 = vmatprep.subr.mxu0 0.0
    %1376 = vmatpush1.msra.mxu0 %v1358
    %1377 = vmatprep.subr.mxu0 0.0
    %1378 = vmatpush1.msra.mxu0 %v1359
    %1379 = vmatprep.subr.mxu0 0.0
    %1380 = vmatpush1.msra.mxu0 0.0
    %1381 = vmatprep.subr.mxu0 0.0
    %1382 = vmatpush1.msra.mxu0 0.0
    %1383 = vmatprep.subr.mxu0 0.0
    %1384 = vmatpush1.msra.mxu0 0.0
    %1385 = vmatprep.subr.mxu0 0.0
    %1386 = vmatpush1.msra.mxu0 0.0
    %1387 = vmatprep.subr.mxu0 0.0
    %1388 = vmatpush1.msra.mxu0 0.0
    %1389 = vmatprep.subr.mxu0 0.0
    %1390 = vmatpush1.msra.mxu0 0.0
    %1391 = vmatprep.subr.mxu0 0.0
    %1392 = vmatpush1.msra.mxu0 0.0
    %1393 = vmatprep.subr.mxu0 0.0
    %1394 = vmatpush1.msra.mxu0 0.0
    %1395 = vmatprep.subr.mxu0 0.0
    %1396 = vmatpush1.msra.mxu0 0.0
    %1397 = vmatprep.subr.mxu0 0.0
    %1398 = vmatpush1.msra.mxu0 0.0
    %1399 = vmatprep.subr.mxu0 0.0
    %1400 = vmatpush1.msra.mxu0 0.0
    %1401 = vmatprep.subr.mxu0 0.0
    %1402 = vmatpush1.msra.mxu0 0.0
    %1403 = vmatprep.subr.mxu0 0.0
    %1404 = vmatpush1.msra.mxu0 0.0
    %1405 = vmatprep.subr.mxu0 0.0
    %1406 = vmatpush1.msra.mxu0 0.0
    %1407 = vmatprep.subr.mxu0 0.0
    %1408 = vmatpush1.msra.mxu0 0.0
    %1409 = vmatprep.subr.mxu0 0.0
    %1410 = vmatpush1.msra.mxu0 0.0
    %1411 = vmatprep.subr.mxu0 0.0
    %1412 = vmatpush1.msra.mxu0 0.0
    %1413 = vmatprep.subr.mxu0 0.0
    %1414 = vmatpush1.msra.mxu0 0.0
    %1415 = vmatprep.subr.mxu0 0.0
    %1416 = vmatpush1.msra.mxu0 0.0
    %1417 = vmatprep.subr.mxu0 0.0
    %1418 = vmatpush1.msra.mxu0 0.0
    %1419 = vmatprep.subr.mxu0 0.0
    %1420 = vmatpush1.msra.mxu0 0.0
    %1421 = vmatprep.subr.mxu0 0.0
    %1422 = vmatpush1.msra.mxu0 0.0
    %1423 = vmatprep.subr.mxu0 0.0
    %1424 = vmatpush1.msra.mxu0 0.0
    %1425 = vmatprep.subr.mxu0 0.0
    %1426 = vmatpush1.msra.mxu0 0.0
    %1427 = vmatprep.mubr.f32.mxu0 0.0
    %1428 = vmatmul.mubr.f32.gmra.mrb[0].mxu0 %v1361
    %v1429 = vpop.f32.mrb[0].mxu0
    %v1430 = vadd.f32 0.0, %v1429
    %v1431 = vpop.f32.mrb[0].mxu0
    %1432 = vdwg.mxu0
    %v1433 = vadd.f32 %v1279, %v1430
    %vm1434 = vcmask 80896
    %1435 = vst.msk [vmem:[#allocation2] sm:$0xff] %vm1434, %v1433
    // Predicated region
    $region26: #{tpu_custom_call.1} parent=1 // pred_check
      _
    $region27: #{tpu_custom_call.1} parent=1 // pred_check_branch
      %1437 = sbr.rel (0) target = $region29
    $region28: #{tpu_custom_call.1} parent=1 // pred_region
      %s1439 = ssub.s32 128, 128
      %1440 = vsyncadd [#allocation3], %s1439
      %s1442 = sshll.u32 [#allocation2], 4
      %s1443 = int_to_ptr.vmem [resolvable:$true] %s1442
      %1445 = dma.vmem_to_hbm [thread:$0]  %s1443, 128, %s6, [#allocation3]
    $region29: #{tpu_custom_call.1} parent=1 // pred_fallthru
      _
    // Predicated region
    $region30: #{tpu_custom_call.1} parent=1 // pred_check
      _
    $region31: #{tpu_custom_call.1} parent=1 // pred_check_branch
      %1447 = sbr.rel (0) target = $region33
    $region32: #{tpu_custom_call.1} parent=1 // pred_region
      %1448 = dma.done [#allocation3], 128
    $region33: #{tpu_custom_call.1} parent=1 // pred_fallthru
      _
    %1449 = vsyncpa [#allocation3], 1

</llo_original>
